<compile_context>
chip_gen: v7x
topology: tpu7x:2x2x1
jax: 0.10.0
libtpu: 0.0.40
codegen_flags: <defaults>
</compile_context>

<pallas_src>
import functools

import numpy as np
import jax
import jax.numpy as jnp
from jax.experimental import pallas as pl
from jax.experimental.pallas import tpu as pltpu


# ----------------------------------------------------------------------------
# Interpolation matrices (numpy at trace time -> XLA constants).
# ----------------------------------------------------------------------------
def _up2_matrix(n_in: int) -> np.ndarray:
    """(2*n_in, n_in) bilinear x2 matrix, align_corners=True (float64)."""
    n_out = 2 * n_in
    if n_in == 1:
        return np.ones((n_out, 1), np.float64)
    src = np.arange(n_out, dtype=np.float64) * (n_in - 1) / (n_out - 1)
    lo = np.clip(np.floor(src).astype(np.int64), 0, n_in - 2)
    frac = src - lo
    a = np.zeros((n_out, n_in), np.float64)
    rows = np.arange(n_out)
    a[rows, lo] += 1.0 - frac
    a[rows, lo + 1] += frac
    return a


def _up_crop_matrix(n_in: int, factor: int, n_target: int) -> np.ndarray:
    """Per-axis interpolation matrix with the centered crop fused in.

    factor == 4 composes two x2 upsamples (== calling the x2 upsampler twice);
    only the rows inside the centered crop window (torch.narrow with
    start = (up - target) // 2) are kept.  Returns float64 (n_target, n_in).
    """
    assert factor in (2, 4), "up_sampling_factors entries must be 2 or 4"
    a = _up2_matrix(n_in)
    if factor == 4:
        a = _up2_matrix(2 * n_in) @ a
    assert a.shape[0] >= n_target, "crop target larger than upsampled size"
    start = (a.shape[0] - n_target) // 2
    return np.ascontiguousarray(a[start:start + n_target])


# ----------------------------------------------------------------------------
# Fully fused kernel: the whole forward pass for one batch element.
# ----------------------------------------------------------------------------
def _make_kernel(c1, c2, c3, c4):
    o2 = c1
    o3 = c1 + c2
    o4 = c1 + c2 + c3

    def kernel(d1_ref, d2_ref, d3_ref, d4_ref, m2_ref, m3_ref, m4_ref, o_ref):
        # dec1 passthrough channels (final torch.cat(dec1, ...)).
        o_ref[0, :c1, :] = d1_ref[0]
        # Each decoder level: one lane-dense MXU matmul with the composed
        # (upsample ∘ crop ∘ ... ) Kronecker matrix, f32 accumulation.
        o_ref[0, o2:o3, :] = jnp.dot(
            d2_ref[0], m2_ref[...], preferred_element_type=jnp.float32
        ).astype(o_ref.dtype)
        o_ref[0, o3:o4, :] = jnp.dot(
            d3_ref[0], m3_ref[...], preferred_element_type=jnp.float32
        ).astype(o_ref.dtype)
        o_ref[0, o4:, :] = jnp.dot(
            d4_ref[0], m4_ref[...], preferred_element_type=jnp.float32
        ).astype(o_ref.dtype)

    return kernel


# ----------------------------------------------------------------------------
# Forward pass of DeepSupervisionModule: exactly one pallas_call.
# ----------------------------------------------------------------------------
@functools.partial(jax.jit, static_argnames=("up_sampling_factors",))
def deep_supervision_forward(dec4, dec3, dec2, dec1, up_sampling_factors=(2, 2, 2)):
    f = up_sampling_factors
    n, c1, th, tw = dec1.shape
    c2, h2, w2 = dec2.shape[1], dec2.shape[2], dec2.shape[3]
    c3, h3, w3 = dec3.shape[1], dec3.shape[2], dec3.shape[3]
    c4, h4, w4 = dec4.shape[1], dec4.shape[2], dec4.shape[3]
    c_total = c1 + c2 + c3 + c4
    s1, s2, s3, s4 = th * tw, h2 * w2, h3 * w3, h4 * w4
    dtype = dec1.dtype

    # Per-stage, per-axis crop-fused interpolation matrices (float64 numpy).
    a1h = _up_crop_matrix(h4, f[0], h3)   # dec4 spatial -> dec3 spatial
    a1w = _up_crop_matrix(w4, f[0], w3)
    a2h = _up_crop_matrix(h3, f[1], h2)   # dec3 spatial -> dec2 spatial
    a2w = _up_crop_matrix(w3, f[1], w2)
    a3h = _up_crop_matrix(h2, f[2], th)   # dec2 spatial -> dec1 spatial
    a3w = _up_crop_matrix(w2, f[2], tw)

    # Compose per source level (rightmost stage is applied first), then build
    # one (H*W, TH*TW) Kronecker matrix per level.
    h_2, w_2 = a3h, a3w
    h_3, w_3 = a3h @ a2h, a3w @ a2w
    h_4, w_4 = h_3 @ a1h, w_3 @ a1w
    m2 = jnp.asarray(np.kron(h_2, w_2).T, dtype=dtype)   # (S2, S1)
    m3 = jnp.asarray(np.kron(h_3, w_3).T, dtype=dtype)   # (S3, S1)
    m4 = jnp.asarray(np.kron(h_4, w_4).T, dtype=dtype)   # (S4, S1)

    # Free contiguous reshapes: spatial flattened into the lane dimension.
    d1 = dec1.reshape(n, c1, s1)
    d2 = dec2.reshape(n, c2, s2)
    d3 = dec3.reshape(n, c3, s3)
    d4 = dec4.reshape(n, c4, s4)

    out = pl.pallas_call(
        _make_kernel(c1, c2, c3, c4),
        out_shape=jax.ShapeDtypeStruct((n, c_total, s1), dtype),
        grid=(n,),
        in_specs=[
            pl.BlockSpec((1, c1, s1), lambda i: (i, 0, 0)),
            pl.BlockSpec((1, c2, s2), lambda i: (i, 0, 0)),
            pl.BlockSpec((1, c3, s3), lambda i: (i, 0, 0)),
            pl.BlockSpec((1, c4, s4), lambda i: (i, 0, 0)),
            pl.BlockSpec((s2, s1), lambda i: (0, 0)),
            pl.BlockSpec((s3, s1), lambda i: (0, 0)),
            pl.BlockSpec((s4, s1), lambda i: (0, 0)),
        ],
        out_specs=pl.BlockSpec((1, c_total, s1), lambda i: (i, 0, 0)),
        compiler_params=pltpu.CompilerParams(
            dimension_semantics=("parallel",),
        ),
    )(d1, d2, d3, d4, m2, m3, m4)

    # Free (contiguous) reshape back to NCHW.
    return out.reshape(n, c_total, th, tw)


# ----------------------------------------------------------------------------
# Pure-XLA sequential reference (full upsample, then explicit centered crop,
# then concat — mirrors the PyTorch control flow) for a numerical self-check.
# ----------------------------------------------------------------------------
def _ref_up2(x):
    ah = jnp.asarray(_up2_matrix(x.shape[-2]), jnp.float32)
    aw = jnp.asarray(_up2_matrix(x.shape[-1]), jnp.float32)
    return jnp.einsum("th,nchw,uw->nctu", ah, x.astype(jnp.float32), aw)


def _ref_up_crop(x, th, tw, fac):
    y = _ref_up2(x)
    if fac == 4:
        y = _ref_up2(y)
    sh = (y.shape[-2] - th) // 2
    sw = (y.shape[-1] - tw) // 2
    return y[..., sh:sh + th, sw:sw + tw]


def _reference_forward(dec4, dec3, dec2, dec1, factors):
    out = _ref_up_crop(dec4, dec3.shape[-2], dec3.shape[-1], factors[0])
    out = _ref_up_crop(jnp.concatenate([dec3.astype(jnp.float32), out], axis=1),
                       dec2.shape[-2], dec2.shape[-1], factors[1])
    out = _ref_up_crop(jnp.concatenate([dec2.astype(jnp.float32), out], axis=1),
                       dec1.shape[-2], dec1.shape[-1], factors[2])
    return jnp.concatenate([dec1.astype(jnp.float32), out], axis=1).astype(dec1.dtype)


if __name__ == "__main__":
    key = jax.random.PRNGKey(0)

    # ---- Test 1: typical decoder pyramid (spatial doubles each level). -----
    k4, k3, k2, k1 = jax.random.split(key, 4)
    dec4 = jax.random.normal(k4, (2, 4, 4, 4), dtype=jnp.float32)
    dec3 = jax.random.normal(k3, (2, 4, 8, 8), dtype=jnp.float32)
    dec2 = jax.random.normal(k2, (2, 4, 16, 16), dtype=jnp.float32)
    dec1 = jax.random.normal(k1, (2, 4, 32, 32), dtype=jnp.float32)

    out = deep_supervision_forward(dec4, dec3, dec2, dec1,
                                   up_sampling_factors=(2, 2, 2))
    out = jax.block_until_ready(out)
    assert out.shape == (2, 16, 32, 32), out.shape
    assert out.dtype == jnp.float32

    ref = jax.block_until_ready(
        _reference_forward(dec4, dec3, dec2, dec1, (2, 2, 2)))
    assert jnp.allclose(out, ref, atol=1e-4, rtol=1e-4), \
        float(jnp.max(jnp.abs(out - ref)))

    # ---- Test 2: non-doubling sizes so the centered crop is exercised. -----
    k4, k3, k2, k1 = jax.random.split(jax.random.PRNGKey(1), 4)
    dec4b = jax.random.normal(k4, (2, 3, 5, 5), dtype=jnp.float32)
    dec3b = jax.random.normal(k3, (2, 3, 8, 8), dtype=jnp.float32)
    dec2b = jax.random.normal(k2, (2, 2, 14, 14), dtype=jnp.float32)
    dec1b = jax.random.normal(k1, (2, 2, 26, 26), dtype=jnp.float32)

    outb = jax.block_until_ready(
        deep_supervision_forward(dec4b, dec3b, dec2b, dec1b,
                                 up_sampling_factors=(2, 2, 2)))
    assert outb.shape == (2, 10, 26, 26), outb.shape
    refb = jax.block_until_ready(
        _reference_forward(dec4b, dec3b, dec2b, dec1b, (2, 2, 2)))
    assert jnp.allclose(outb, refb, atol=1e-4, rtol=1e-4), \
        float(jnp.max(jnp.abs(outb - refb)))

    print("KERNEL_OK")
</pallas_src>

<mosaic_0001>
module attributes {stable_mosaic.version = 11 : i64} {
  func.func @kernel(%arg0: i32, %arg1: memref<1x4x1024xf32, #tpu.memory_space<vmem>>, %arg2: memref<1x4x256xf32, #tpu.memory_space<vmem>>, %arg3: memref<1x4x64xf32, #tpu.memory_space<vmem>>, %arg4: memref<1x4x16xf32, #tpu.memory_space<vmem>>, %arg5: memref<256x1024xf32, #tpu.memory_space<vmem>>, %arg6: memref<64x1024xf32, #tpu.memory_space<vmem>>, %arg7: memref<16x1024xf32, #tpu.memory_space<vmem>>, %arg8: memref<1x16x1024xf32, #tpu.memory_space<vmem>>) attributes {dimension_semantics = [#tpu.dimension_semantics<parallel>], iteration_bounds = array<i64: 2>, scalar_prefetch = 0 : i64, scratch_operands = 0 : i64, tpu.core_type = #tpu.core_type<tc>, window_params = [{transform_indices = @transform_0, window_bounds = array<i64: 1, 4, 1024>}, {transform_indices = @transform_1, window_bounds = array<i64: 1, 4, 256>}, {transform_indices = @transform_2, window_bounds = array<i64: 1, 4, 64>}, {transform_indices = @transform_3, window_bounds = array<i64: 1, 4, 16>}, {pipeline_mode = #tpu.pipeline_mode<synchronous>, transform_indices = @transform_4, window_bounds = array<i64: 256, 1024>}, {pipeline_mode = #tpu.pipeline_mode<synchronous>, transform_indices = @transform_5, window_bounds = array<i64: 64, 1024>}, {pipeline_mode = #tpu.pipeline_mode<synchronous>, transform_indices = @transform_6, window_bounds = array<i64: 16, 1024>}, {transform_indices = @transform_7, window_bounds = array<i64: 1, 16, 1024>}]} {
    %c0 = arith.constant 0 : index
    %c0_0 = arith.constant 0 : index
    %c0_1 = arith.constant 0 : index
    %0 = vector.load %arg1[%c0, %c0_0, %c0_1] : memref<1x4x1024xf32, #tpu.memory_space<vmem>>, vector<1x4x1024xf32>
    %1 = vector.shape_cast %0 : vector<1x4x1024xf32> to vector<4x1024xf32>
    %c0_2 = arith.constant 0 : index
    %c0_3 = arith.constant 0 : index
    %c0_4 = arith.constant 0 : index
    %2 = vector.load %arg8[%c0_2, %c0_3, %c0_4] : memref<1x16x1024xf32, #tpu.memory_space<vmem>>, vector<1x4x1024xf32>
    %3 = vector.shape_cast %2 : vector<1x4x1024xf32> to vector<4x1024xf32>
    %4 = vector.shape_cast %1 : vector<4x1024xf32> to vector<1x4x1024xf32>
    tpu.vector_store %arg8[%c0_2, %c0_3, %c0_4], %4 {strides = array<i32>} : memref<1x16x1024xf32, #tpu.memory_space<vmem>>, vector<1x4x1024xf32>,
    %c0_5 = arith.constant 0 : index
    %c0_6 = arith.constant 0 : index
    %c0_7 = arith.constant 0 : index
    %5 = vector.load %arg2[%c0_5, %c0_6, %c0_7] : memref<1x4x256xf32, #tpu.memory_space<vmem>>, vector<1x4x256xf32>
    %6 = vector.shape_cast %5 : vector<1x4x256xf32> to vector<4x256xf32>
    %c0_8 = arith.constant 0 : index
    %c0_9 = arith.constant 0 : index
    %7 = vector.load %arg5[%c0_8, %c0_9] : memref<256x1024xf32, #tpu.memory_space<vmem>>, vector<256x1024xf32>
    %cst = arith.constant dense<0.000000e+00> : vector<4x1024xf32>
    %8 = tpu.matmul %6, %7, %cst {dimension_numbers = #tpu.dot_dimension_numbers<[1], [0], [0], [1], [0, 0, 1, 1], [], []>} : vector<4x256xf32>, vector<256x1024xf32>, vector<4x1024xf32> -> vector<4x1024xf32>
    %c0_10 = arith.constant 0 : index
    %c4 = arith.constant 4 : index
    %c0_11 = arith.constant 0 : index
    %9 = vector.load %arg8[%c0_10, %c4, %c0_11] : memref<1x16x1024xf32, #tpu.memory_space<vmem>>, vector<1x4x1024xf32>
    %10 = vector.shape_cast %9 : vector<1x4x1024xf32> to vector<4x1024xf32>
    %11 = vector.shape_cast %8 : vector<4x1024xf32> to vector<1x4x1024xf32>
    tpu.vector_store %arg8[%c0_10, %c4, %c0_11], %11 {strides = array<i32>} : memref<1x16x1024xf32, #tpu.memory_space<vmem>>, vector<1x4x1024xf32>,
    %c0_12 = arith.constant 0 : index
    %c0_13 = arith.constant 0 : index
    %c0_14 = arith.constant 0 : index
    %12 = vector.load %arg3[%c0_12, %c0_13, %c0_14] : memref<1x4x64xf32, #tpu.memory_space<vmem>>, vector<1x4x64xf32>
    %13 = vector.shape_cast %12 : vector<1x4x64xf32> to vector<4x64xf32>
    %c0_15 = arith.constant 0 : index
    %c0_16 = arith.constant 0 : index
    %14 = vector.load %arg6[%c0_15, %c0_16] : memref<64x1024xf32, #tpu.memory_space<vmem>>, vector<64x1024xf32>
    %cst_17 = arith.constant dense<0.000000e+00> : vector<4x1024xf32>
    %15 = tpu.matmul %13, %14, %cst_17 {dimension_numbers = #tpu.dot_dimension_numbers<[1], [0], [0], [1], [0, 0, 1, 1], [], []>} : vector<4x64xf32>, vector<64x1024xf32>, vector<4x1024xf32> -> vector<4x1024xf32>
    %c0_18 = arith.constant 0 : index
    %c8 = arith.constant 8 : index
    %c0_19 = arith.constant 0 : index
    %16 = vector.load %arg8[%c0_18, %c8, %c0_19] : memref<1x16x1024xf32, #tpu.memory_space<vmem>>, vector<1x4x1024xf32>
    %17 = vector.shape_cast %16 : vector<1x4x1024xf32> to vector<4x1024xf32>
    %18 = vector.shape_cast %15 : vector<4x1024xf32> to vector<1x4x1024xf32>
    tpu.vector_store %arg8[%c0_18, %c8, %c0_19], %18 {strides = array<i32>} : memref<1x16x1024xf32, #tpu.memory_space<vmem>>, vector<1x4x1024xf32>,
    %c0_20 = arith.constant 0 : index
    %c0_21 = arith.constant 0 : index
    %c0_22 = arith.constant 0 : index
    %19 = vector.load %arg4[%c0_20, %c0_21, %c0_22] : memref<1x4x16xf32, #tpu.memory_space<vmem>>, vector<1x4x16xf32>
    %20 = vector.shape_cast %19 : vector<1x4x16xf32> to vector<4x16xf32>
    %c0_23 = arith.constant 0 : index
    %c0_24 = arith.constant 0 : index
    %21 = vector.load %arg7[%c0_23, %c0_24] : memref<16x1024xf32, #tpu.memory_space<vmem>>, vector<16x1024xf32>
    %cst_25 = arith.constant dense<0.000000e+00> : vector<4x1024xf32>
    %22 = tpu.matmul %20, %21, %cst_25 {dimension_numbers = #tpu.dot_dimension_numbers<[1], [0], [0], [1], [0, 0, 1, 1], [], []>} : vector<4x16xf32>, vector<16x1024xf32>, vector<4x1024xf32> -> vector<4x1024xf32>
    %c0_26 = arith.constant 0 : index
    %c12 = arith.constant 12 : index
    %c0_27 = arith.constant 0 : index
    %23 = vector.load %arg8[%c0_26, %c12, %c0_27] : memref<1x16x1024xf32, #tpu.memory_space<vmem>>, vector<1x4x1024xf32>
    %24 = vector.shape_cast %23 : vector<1x4x1024xf32> to vector<4x1024xf32>
    %25 = vector.shape_cast %22 : vector<4x1024xf32> to vector<1x4x1024xf32>
    tpu.vector_store %arg8[%c0_26, %c12, %c0_27], %25 {strides = array<i32>} : memref<1x16x1024xf32, #tpu.memory_space<vmem>>, vector<1x4x1024xf32>,
    return
  }
  func.func @transform_0(%arg0: i32) -> (i32, i32, i32) {
    %c0_i32 = arith.constant 0 : i32
    %c0_i32_0 = arith.constant 0 : i32
    %c0_i32_1 = arith.constant 0 : i32
    return %arg0, %c0_i32, %c0_i32_0 : i32, i32, i32
  }
  func.func @transform_1(%arg0: i32) -> (i32, i32, i32) {
    %c0_i32 = arith.constant 0 : i32
    %c0_i32_0 = arith.constant 0 : i32
    %c0_i32_1 = arith.constant 0 : i32
    return %arg0, %c0_i32, %c0_i32_0 : i32, i32, i32
  }
  func.func @transform_2(%arg0: i32) -> (i32, i32, i32) {
    %c0_i32 = arith.constant 0 : i32
    %c0_i32_0 = arith.constant 0 : i32
    %c0_i32_1 = arith.constant 0 : i32
    return %arg0, %c0_i32, %c0_i32_0 : i32, i32, i32
  }
  func.func @transform_3(%arg0: i32) -> (i32, i32, i32) {
    %c0_i32 = arith.constant 0 : i32
    %c0_i32_0 = arith.constant 0 : i32
    %c0_i32_1 = arith.constant 0 : i32
    return %arg0, %c0_i32, %c0_i32_0 : i32, i32, i32
  }
  func.func @transform_4(%arg0: i32) -> (i32, i32) {
    %c0_i32 = arith.constant 0 : i32
    %c0_i32_0 = arith.constant 0 : i32
    %c0_i32_1 = arith.constant 0 : i32
    return %c0_i32, %c0_i32_0 : i32, i32
  }
  func.func @transform_5(%arg0: i32) -> (i32, i32) {
    %c0_i32 = arith.constant 0 : i32
    %c0_i32_0 = arith.constant 0 : i32
    %c0_i32_1 = arith.constant 0 : i32
    return %c0_i32, %c0_i32_0 : i32, i32
  }
  func.func @transform_6(%arg0: i32) -> (i32, i32) {
    %c0_i32 = arith.constant 0 : i32
    %c0_i32_0 = arith.constant 0 : i32
    %c0_i32_1 = arith.constant 0 : i32
    return %c0_i32, %c0_i32_0 : i32, i32
  }
  func.func @transform_7(%arg0: i32) -> (i32, i32, i32) {
    %c0_i32 = arith.constant 0 : i32
    %c0_i32_0 = arith.constant 0 : i32
    %c0_i32_1 = arith.constant 0 : i32
    return %arg0, %c0_i32, %c0_i32_0 : i32, i32, i32
  }
}

</mosaic_0001>

<llo_original>
// kernel: deep_supervision_forward.1
$region0: #{deep_supervision_forward.1}
  #allocation0 [shape = 'u32[]', space=smem, size = 0x4, offset = 0x4, fixed_abs, tag = 'smem constant byte address 0x4 - core index']
  #allocation1 [shape = 'u32[144,128]{1,0:T(1,128)}', space=vmem, size = 0x12000, scoped, tag = 'internal scratch']
  %s0 = inlined_call_operand.vmem [shape: f32[2,4,1024], index: 0, kind: input, shape index: {}]
  %s1 = inlined_call_operand.vmem [shape: f32[2,4,256], index: 1, kind: input, shape index: {}]
  %s2 = inlined_call_operand.vmem [shape: f32[2,4,64], index: 2, kind: input, shape index: {}]
  %s3 = inlined_call_operand.vmem [shape: f32[2,4,16], index: 3, kind: input, shape index: {}]
  %s4 = inlined_call_operand.hbm [shape: f32[256,1024], index: 4, kind: input, shape index: {}]
  %s5 = inlined_call_operand.vmem [shape: f32[64,1024], index: 5, kind: input, shape index: {}]
  %s6 = inlined_call_operand.hbm [shape: f32[16,1024], index: 6, kind: input, shape index: {}]
  %s7 = inlined_call_operand.vmem [shape: f32[2,16,1024], index: 7, kind: output, shape index: {}]
  %s8 = sld [smem:[#allocation0]]
  $region69: #{deep_supervision_forward.1} parent=0
    _
  %s10 = ssub.s32 1, %s8
  %s11 = scalar_select 0, %s10, %s8
  $region1: #{deep_supervision_forward.1} parent=0
    #allocation2 [shape = 'u8[1048576]{0}', space=vmem, size = 0x100000, scoped, tag = 'input window, operand 4, single buffered']
    #allocation3 [shape = 's32[2]{0}', space=sflag, size = 0x8, scoped, tag = 'scoped memory for deep_supervision_forward.1']
    #allocation4 [shape = 'u8[65536]{0}', space=vmem, size = 0x10000, scoped, tag = 'input window, operand 6, single buffered']
    #allocation5 [shape = 's32[1]{0}', space=sflag, size = 0x4, scoped, tag = 'scoped memory for deep_supervision_forward.1']
    %12 = vsyncpa [#allocation3], 0
    %13 = vsyncpa [#allocation5], 0
    loop: start=0, step=1, limit=4
    $region2: #{deep_supervision_forward.1} parent=1 // loop_pre_header
      _
    $region3: #{deep_supervision_forward.1} parent=1 // loop_header
      %s15 = sphi 0, %s19
      %p16 = scmp.ge.s32.totalorder %s15, 4
      %s25 = sphi 0, %s27
      %s28 = sphi 0, %s25
      %s29 = sphi 0, %s28
      %s45 = sphi 0, %s29
      %s51 = sphi 0, %s53
      %s54 = sphi 0, %s51
      %s55 = sphi 0, %s54
      %s71 = sphi 0, %s55
      %s77 = sphi 0, %s79
      %s80 = sphi 0, %s77
      %s81 = sphi 0, %s80
      %s97 = sphi 0, %s81
      %s103 = sphi 0, %s105
      %s106 = sphi 0, %s103
      %s107 = sphi 0, %s106
      %s123 = sphi 0, %s107
      %s127 = sphi 0, %s127
      %s129 = sphi 0, %s127
      %s130 = sphi 0, %s129
      %s144 = sphi 0, %s130
      %s148 = sphi 0, %s148
      %s150 = sphi 0, %s148
      %s151 = sphi 0, %s150
      %s165 = sphi 0, %s151
      %s169 = sphi 0, %s169
      %s171 = sphi 0, %s169
      %s172 = sphi 0, %s171
      %s186 = sphi 0, %s172
      %s192 = sphi 0, %s194
      %s195 = sphi 0, %s192
      %s196 = sphi 0, %s195
      %s212 = sphi 0, %s196
    $region4: #{deep_supervision_forward.1} parent=1 // loop_header_branch
      %18 = sbr.rel (%p16) target = $region8
    $region5: #{deep_supervision_forward.1} parent=1 // loop_body
      %s20 = ssub.s32 %s15, 1
      %s21 = ssub.s32 %s15, 2
      %s22 = sadd.s32 %s15, 1
      %s23 = ssub.s32 %s15, %s22
      %p24 = scmp.eq.s32.totalorder %s23, 0
      %s26 = sadd.s32 %s25, 1
      %s27 = scalar_select %p24, %s25, %s26
      %p30 = pneg %p24
      %p31 = scmp.eq.s32.totalorder %s15, 1
      %p32 = por %p30, %p31
      %p33 = scmp.ne.s32.totalorder %s25, %s28
      %p34 = scmp.eq.s32.totalorder %s15, 0
      %p35 = por %p33, %p34
      %p36 = scmp.ne.s32.totalorder %s25, %s28
      %p37 = scmp.eq.s32.totalorder %s20, 1
      %p38 = por %p36, %p37
      %p39 = scmp.ne.s32.totalorder %s28, %s29
      %p40 = scmp.eq.s32.totalorder %s20, 0
      %p41 = por %p39, %p40
      %p42 = scmp.ne.s32.totalorder %s28, %s29
      %p43 = scmp.eq.s32.totalorder %s21, 1
      %p44 = por %p42, %p43
      %p46 = scmp.ne.s32.totalorder %s29, %s45
      %p47 = scmp.eq.s32.totalorder %s21, 0
      %p48 = por %p46, %p47
      %s49 = ssub.s32 %s15, %s22
      %p50 = scmp.eq.s32.totalorder %s49, 0
      %s52 = sadd.s32 %s51, 1
      %s53 = scalar_select %p50, %s51, %s52
      %p56 = pneg %p50
      %p57 = scmp.eq.s32.totalorder %s15, 1
      %p58 = por %p56, %p57
      %p59 = scmp.ne.s32.totalorder %s51, %s54
      %p60 = scmp.eq.s32.totalorder %s15, 0
      %p61 = por %p59, %p60
      %p62 = scmp.ne.s32.totalorder %s51, %s54
      %p63 = scmp.eq.s32.totalorder %s20, 1
      %p64 = por %p62, %p63
      %p65 = scmp.ne.s32.totalorder %s54, %s55
      %p66 = scmp.eq.s32.totalorder %s20, 0
      %p67 = por %p65, %p66
      %p68 = scmp.ne.s32.totalorder %s54, %s55
      %p69 = scmp.eq.s32.totalorder %s21, 1
      %p70 = por %p68, %p69
      %p72 = scmp.ne.s32.totalorder %s55, %s71
      %p73 = scmp.eq.s32.totalorder %s21, 0
      %p74 = por %p72, %p73
      %s75 = ssub.s32 %s15, %s22
      %p76 = scmp.eq.s32.totalorder %s75, 0
      %s78 = sadd.s32 %s77, 1
      %s79 = scalar_select %p76, %s77, %s78
      %p82 = pneg %p76
      %p83 = scmp.eq.s32.totalorder %s15, 1
      %p84 = por %p82, %p83
      %p85 = scmp.ne.s32.totalorder %s77, %s80
      %p86 = scmp.eq.s32.totalorder %s15, 0
      %p87 = por %p85, %p86
      %p88 = scmp.ne.s32.totalorder %s77, %s80
      %p89 = scmp.eq.s32.totalorder %s20, 1
      %p90 = por %p88, %p89
      %p91 = scmp.ne.s32.totalorder %s80, %s81
      %p92 = scmp.eq.s32.totalorder %s20, 0
      %p93 = por %p91, %p92
      %p94 = scmp.ne.s32.totalorder %s80, %s81
      %p95 = scmp.eq.s32.totalorder %s21, 1
      %p96 = por %p94, %p95
      %p98 = scmp.ne.s32.totalorder %s81, %s97
      %p99 = scmp.eq.s32.totalorder %s21, 0
      %p100 = por %p98, %p99
      %s101 = ssub.s32 %s15, %s22
      %p102 = scmp.eq.s32.totalorder %s101, 0
      %s104 = sadd.s32 %s103, 1
      %s105 = scalar_select %p102, %s103, %s104
      %p108 = pneg %p102
      %p109 = scmp.eq.s32.totalorder %s15, 1
      %p110 = por %p108, %p109
      %p111 = scmp.ne.s32.totalorder %s103, %s106
      %p112 = scmp.eq.s32.totalorder %s15, 0
      %p113 = por %p111, %p112
      %p114 = scmp.ne.s32.totalorder %s103, %s106
      %p115 = scmp.eq.s32.totalorder %s20, 1
      %p116 = por %p114, %p115
      %p117 = scmp.ne.s32.totalorder %s106, %s107
      %p118 = scmp.eq.s32.totalorder %s20, 0
      %p119 = por %p117, %p118
      %p120 = scmp.ne.s32.totalorder %s106, %s107
      %p121 = scmp.eq.s32.totalorder %s21, 1
      %p122 = por %p120, %p121
      %p124 = scmp.ne.s32.totalorder %s107, %s123
      %p125 = scmp.eq.s32.totalorder %s21, 0
      %p126 = por %p124, %p125
      %s128 = sadd.s32 %s127, 1
      %p131 = scmp.eq.s32.totalorder %s15, 1
      %p132 = scmp.ne.s32.totalorder %s127, %s129
      %p133 = scmp.eq.s32.totalorder %s15, 0
      %p134 = por %p132, %p133
      %p135 = scmp.ne.s32.totalorder %s127, %s129
      %p136 = scmp.eq.s32.totalorder %s20, 1
      %p137 = por %p135, %p136
      %p138 = scmp.ne.s32.totalorder %s129, %s130
      %p139 = scmp.eq.s32.totalorder %s20, 0
      %p140 = por %p138, %p139
      %p141 = scmp.ne.s32.totalorder %s129, %s130
      %p142 = scmp.eq.s32.totalorder %s21, 1
      %p143 = por %p141, %p142
      %p145 = scmp.ne.s32.totalorder %s130, %s144
      %p146 = scmp.eq.s32.totalorder %s21, 0
      %p147 = por %p145, %p146
      %s149 = sadd.s32 %s148, 1
      %p152 = scmp.eq.s32.totalorder %s15, 1
      %p153 = scmp.ne.s32.totalorder %s148, %s150
      %p154 = scmp.eq.s32.totalorder %s15, 0
      %p155 = por %p153, %p154
      %p156 = scmp.ne.s32.totalorder %s148, %s150
      %p157 = scmp.eq.s32.totalorder %s20, 1
      %p158 = por %p156, %p157
      %p159 = scmp.ne.s32.totalorder %s150, %s151
      %p160 = scmp.eq.s32.totalorder %s20, 0
      %p161 = por %p159, %p160
      %p162 = scmp.ne.s32.totalorder %s150, %s151
      %p163 = scmp.eq.s32.totalorder %s21, 1
      %p164 = por %p162, %p163
      %p166 = scmp.ne.s32.totalorder %s151, %s165
      %p167 = scmp.eq.s32.totalorder %s21, 0
      %p168 = por %p166, %p167
      %s170 = sadd.s32 %s169, 1
      %p173 = scmp.eq.s32.totalorder %s15, 1
      %p174 = scmp.ne.s32.totalorder %s169, %s171
      %p175 = scmp.eq.s32.totalorder %s15, 0
      %p176 = por %p174, %p175
      %p177 = scmp.ne.s32.totalorder %s169, %s171
      %p178 = scmp.eq.s32.totalorder %s20, 1
      %p179 = por %p177, %p178
      %p180 = scmp.ne.s32.totalorder %s171, %s172
      %p181 = scmp.eq.s32.totalorder %s20, 0
      %p182 = por %p180, %p181
      %p183 = scmp.ne.s32.totalorder %s171, %s172
      %p184 = scmp.eq.s32.totalorder %s21, 1
      %p185 = por %p183, %p184
      %p187 = scmp.ne.s32.totalorder %s172, %s186
      %p188 = scmp.eq.s32.totalorder %s21, 0
      %p189 = por %p187, %p188
      %s190 = ssub.s32 %s15, %s22
      %p191 = scmp.eq.s32.totalorder %s190, 0
      %s193 = sadd.s32 %s192, 1
      %s194 = scalar_select %p191, %s192, %s193
      %p197 = pneg %p191
      %p198 = scmp.eq.s32.totalorder %s15, 1
      %p199 = por %p197, %p198
      %p200 = scmp.ne.s32.totalorder %s192, %s195
      %p201 = scmp.eq.s32.totalorder %s15, 0
      %p202 = por %p200, %p201
      %p203 = scmp.ne.s32.totalorder %s192, %s195
      %p204 = scmp.eq.s32.totalorder %s20, 1
      %p205 = por %p203, %p204
      %p206 = scmp.ne.s32.totalorder %s195, %s196
      %p207 = scmp.eq.s32.totalorder %s20, 0
      %p208 = por %p206, %p207
      %p209 = scmp.ne.s32.totalorder %s195, %s196
      %p210 = scmp.eq.s32.totalorder %s21, 1
      %p211 = por %p209, %p210
      %p213 = scmp.ne.s32.totalorder %s196, %s212
      %p214 = scmp.eq.s32.totalorder %s21, 0
      %p215 = por %p213, %p214
      %p216 = scmp.le.s32.totalorder 1, %s15
      %p217 = scmp.lt.s32.totalorder %s15, 3
      %p218 = pnand %p216, %p217
      %p219 = pneg %p218
      // Predicated region
      $region9: #{deep_supervision_forward.1} parent=5 // pred_check
        _
      $region10: #{deep_supervision_forward.1} parent=5 // pred_check_branch
        %221 = sbr.rel (%p218) target = $region12
      $region11: #{deep_supervision_forward.1} parent=5 // pred_region
        %s222 = ssub.s32 %s15, 1
        // Predicated region
        $region13: #{deep_supervision_forward.1} parent=11 // pred_check
          %p223 = pneg %p140
        $region14: #{deep_supervision_forward.1} parent=11 // pred_check_branch
          %225 = sbr.rel (%p223) target = $region16
        $region15: #{deep_supervision_forward.1} parent=11 // pred_region
          %s227 = ssub.s32 32768, 32768
          %228 = vsyncadd [#allocation3], %s227
          %s229 = sshll.u32 [#allocation2], 4
          %s230 = int_to_ptr.vmem [resolvable:$true] %s229
          %235 = dma.hbm_to_vmem [thread:$0]  %s4, 32768, %s230, [#allocation3], 1024, 1024, 64
        $region16: #{deep_supervision_forward.1} parent=11 // pred_fallthru
          _
        // Predicated region
        $region17: #{deep_supervision_forward.1} parent=11 // pred_check
          %p236 = pneg %p161
        $region18: #{deep_supervision_forward.1} parent=11 // pred_check_branch
          %238 = sbr.rel (%p236) target = $region20
        $region19: #{deep_supervision_forward.1} parent=11 // pred_region
          _
        $region20: #{deep_supervision_forward.1} parent=11 // pred_fallthru
          _
        // Predicated region
        $region21: #{deep_supervision_forward.1} parent=11 // pred_check
          %p239 = pneg %p182
        $region22: #{deep_supervision_forward.1} parent=11 // pred_check_branch
          %241 = sbr.rel (%p239) target = $region24
        $region23: #{deep_supervision_forward.1} parent=11 // pred_region
          %s243 = ssub.s32 2048, 2048
          %244 = vsyncadd [#allocation5], %s243
          %s245 = sshll.u32 [#allocation4], 4
          %s246 = int_to_ptr.vmem [resolvable:$true] %s245
          %251 = dma.hbm_to_vmem [thread:$0]  %s6, 2048, %s246, [#allocation5], 1024, 1024, 64
        $region24: #{deep_supervision_forward.1} parent=11 // pred_fallthru
          _
      $region12: #{deep_supervision_forward.1} parent=5 // pred_fallthru
        _
      %p252 = scmp.lt.s32.totalorder %s15, 2
      // Predicated region
      $region25: #{deep_supervision_forward.1} parent=5 // pred_check
        %p253 = pneg %p252
      $region26: #{deep_supervision_forward.1} parent=5 // pred_check_branch
        %255 = sbr.rel (%p253) target = $region28
      $region27: #{deep_supervision_forward.1} parent=5 // pred_region
        // Predicated region
        $region29: #{deep_supervision_forward.1} parent=27 // pred_check
          %p256 = pneg %p35
        $region30: #{deep_supervision_forward.1} parent=27 // pred_check_branch
          %258 = sbr.rel (%p256) target = $region32
        $region31: #{deep_supervision_forward.1} parent=27 // pred_region
          %p259 = scmp.lt.s32.totalorder %s15, 1
          %s260 = scalar_select %p259, %s15, 1
          %s261 = smul.addr %s260, 8
          %s262 = smul.addr %s261, 4
          %s263 = scalar_lea.vmem %s0, %s262
        $region32: #{deep_supervision_forward.1} parent=27 // pred_fallthru
          _
        // Predicated region
        $region33: #{deep_supervision_forward.1} parent=27 // pred_check
          %p264 = pneg %p61
        $region34: #{deep_supervision_forward.1} parent=27 // pred_check_branch
          %266 = sbr.rel (%p264) target = $region36
        $region35: #{deep_supervision_forward.1} parent=27 // pred_region
          %p267 = scmp.lt.s32.totalorder %s15, 1
          %s268 = scalar_select %p267, %s15, 1
          %s269 = smul.addr %s268, 2
          %s270 = smul.addr %s269, 4
          %s271 = scalar_lea.vmem %s1, %s270
        $region36: #{deep_supervision_forward.1} parent=27 // pred_fallthru
          _
        // Predicated region
        $region37: #{deep_supervision_forward.1} parent=27 // pred_check
          %p272 = pneg %p87
        $region38: #{deep_supervision_forward.1} parent=27 // pred_check_branch
          %274 = sbr.rel (%p272) target = $region40
        $region39: #{deep_supervision_forward.1} parent=27 // pred_region
          %p275 = scmp.lt.s32.totalorder %s15, 1
          %s276 = scalar_select %p275, %s15, 1
          %s277 = smul.addr %s276, 4
          %s278 = scalar_lea.vmem %s2, %s277
        $region40: #{deep_supervision_forward.1} parent=27 // pred_fallthru
          _
        // Predicated region
        $region41: #{deep_supervision_forward.1} parent=27 // pred_check
          %p279 = pneg %p113
        $region42: #{deep_supervision_forward.1} parent=27 // pred_check_branch
          %281 = sbr.rel (%p279) target = $region44
        $region43: #{deep_supervision_forward.1} parent=27 // pred_region
          %p282 = scmp.lt.s32.totalorder %s15, 1
          %s283 = scalar_select %p282, %s15, 1
          %s284 = smul.addr %s283, 4
          %s285 = scalar_lea.vmem %s3, %s284
        $region44: #{deep_supervision_forward.1} parent=27 // pred_fallthru
          _
      $region28: #{deep_supervision_forward.1} parent=5 // pred_fallthru
        _
      %p286 = scmp.le.s32.totalorder 1, %s15
      %p287 = scmp.lt.s32.totalorder %s15, 3
      %p288 = pnand %p286, %p287
      %p289 = pneg %p288
      // Predicated region
      $region45: #{deep_supervision_forward.1} parent=5 // pred_check
        _
      $region46: #{deep_supervision_forward.1} parent=5 // pred_check_branch
        %291 = sbr.rel (%p288) target = $region48
      $region47: #{deep_supervision_forward.1} parent=5 // pred_region
        %s292 = ssub.s32 %s15, 1
        // Predicated region
        $region49: #{deep_supervision_forward.1} parent=47 // pred_check
          %p293 = pneg %p140
        $region50: #{deep_supervision_forward.1} parent=47 // pred_check_branch
          %295 = sbr.rel (%p293) target = $region52
        $region51: #{deep_supervision_forward.1} parent=47 // pred_region
          %296 = dma.done [#allocation3], 32768
        $region52: #{deep_supervision_forward.1} parent=47 // pred_fallthru
          _
        // Predicated region
        $region53: #{deep_supervision_forward.1} parent=47 // pred_check
          %p297 = pneg %p182
        $region54: #{deep_supervision_forward.1} parent=47 // pred_check_branch
          %299 = sbr.rel (%p297) target = $region56
        $region55: #{deep_supervision_forward.1} parent=47 // pred_region
          %300 = dma.done [#allocation5], 2048
        $region56: #{deep_supervision_forward.1} parent=47 // pred_fallthru
          _
        %p301 = scmp.lt.s32.totalorder %s20, 1
        %s302 = scalar_select %p301, %s20, 1
        %s303 = smul.addr %s302, 8
        %s304 = smul.addr %s303, 4
        %s305 = scalar_lea.vmem %s0, %s304
        %p306 = pneg %p41
        %p307 = pneg %p38
        %p308 = scmp.lt.s32.totalorder %s20, 1
        %s309 = scalar_select %p308, %s20, 1
        %s310 = smul.addr %s309, 2
        %s311 = smul.addr %s310, 4
        %s312 = scalar_lea.vmem %s1, %s311
        %p313 = pneg %p67
        %p314 = pneg %p64
        %p315 = scmp.lt.s32.totalorder %s20, 1
        %s316 = scalar_select %p315, %s20, 1
        %s317 = smul.addr %s316, 4
        %s318 = scalar_lea.vmem %s2, %s317
        %p319 = pneg %p93
        %p320 = pneg %p90
        %p321 = scmp.lt.s32.totalorder %s20, 1
        %s322 = scalar_select %p321, %s20, 1
        %s323 = smul.addr %s322, 4
        %s324 = scalar_lea.vmem %s3, %s323
        %p325 = pneg %p119
        %p326 = pneg %p116
        %p327 = pneg %p140
        %p328 = pneg %p137
        %p329 = pneg %p161
        %p330 = pneg %p158
        %p331 = pneg %p182
        %p332 = pneg %p179
        %p333 = pneg %p208
        %p334 = pneg %p205
        %p335 = scmp.lt.s32.totalorder %s20, 1
        %s336 = scalar_select %p335, %s20, 1
        %s337 = smul.addr %s336, 16
        %s338 = smul.addr %s337, 8
        %s339 = scalar_lea.vmem %s7, %s338
        %p340 = scmp.lt.s32.totalorder %s20, 1
        %s341 = scalar_select %p340, %s20, 1
        %s342 = smul.addr %s341, 8
        %s343 = smul.addr %s342, 4
        %s344 = scalar_lea.vmem %s0, %s343
        %p345 = scmp.lt.s32.totalorder %s20, 1
        %s346 = scalar_select %p345, %s20, 1
        %s347 = smul.addr %s346, 2
        %s348 = smul.addr %s347, 4
        %s349 = scalar_lea.vmem %s1, %s348
        %p350 = scmp.lt.s32.totalorder %s20, 1
        %s351 = scalar_select %p350, %s20, 1
        %s352 = smul.addr %s351, 4
        %s353 = scalar_lea.vmem %s2, %s352
        %p354 = scmp.lt.s32.totalorder %s20, 1
        %s355 = scalar_select %p354, %s20, 1
        %s356 = smul.addr %s355, 4
        %s357 = scalar_lea.vmem %s3, %s356
        %p358 = scmp.lt.s32.totalorder %s20, 1
        %s359 = scalar_select %p358, %s20, 1
        %s360 = smul.addr %s359, 16
        %s361 = smul.addr %s360, 8
        %s362 = scalar_lea.vmem %s7, %s361
        %v363 = vld [vmem:[%s344] sm:$0xff]
        %v364 = vld [vmem:[%s344 + $0x8] sm:$0xff]
        %v365 = vld [vmem:[%s344 + $0x10] sm:$0xff]
        %v366 = vld [vmem:[%s344 + $0x18] sm:$0xff]
        %v371 = vcombine.high %v363, %v363
        %v372 = vcombine.high %v364, %v364
        %v373 = vcombine.high %v365, %v365
        %v374 = vcombine.high %v366, %v366
        %379 = vst [vmem:[%s362] sm:$0xf] %v363
        %380 = vst [vmem:[%s362 + $0x8] sm:$0xf] %v371
        %381 = vst [vmem:[%s362 + $0x10] sm:$0xf] %v364
        %382 = vst [vmem:[%s362 + $0x18] sm:$0xf] %v372
        %383 = vst [vmem:[%s362 + $0x20] sm:$0xf] %v365
        %384 = vst [vmem:[%s362 + $0x28] sm:$0xf] %v373
        %385 = vst [vmem:[%s362 + $0x30] sm:$0xf] %v366
        %386 = vst [vmem:[%s362 + $0x38] sm:$0xf] %v374
        %v387 = vld [vmem:[%s349] sm:$0xff]
        %v388 = vld [vmem:[#allocation2] sm:$0xff]
        %v389 = vld [vmem:[#allocation2 + $0x8] sm:$0xff]
        %v390 = vld [vmem:[#allocation2 + $0x10] sm:$0xff]
        %v391 = vld [vmem:[#allocation2 + $0x18] sm:$0xff]
        %v392 = vld [vmem:[#allocation2 + $0x20] sm:$0xff]
        %v393 = vld [vmem:[#allocation2 + $0x28] sm:$0xff]
        %v394 = vld [vmem:[#allocation2 + $0x30] sm:$0xff]
        %v395 = vld [vmem:[#allocation2 + $0x38] sm:$0xff]
        %v396 = vld [vmem:[#allocation2 + $0x40] sm:$0xff]
        %v397 = vld [vmem:[#allocation2 + $0x48] sm:$0xff]
        %v398 = vld [vmem:[#allocation2 + $0x50] sm:$0xff]
        %v399 = vld [vmem:[#allocation2 + $0x58] sm:$0xff]
        %v400 = vld [vmem:[#allocation2 + $0x60] sm:$0xff]
        %v401 = vld [vmem:[#allocation2 + $0x68] sm:$0xff]
        %v402 = vld [vmem:[#allocation2 + $0x70] sm:$0xff]
        %v403 = vld [vmem:[#allocation2 + $0x78] sm:$0xff]
        %v404 = vld [vmem:[#allocation2 + $0x80] sm:$0xff]
        %v405 = vld [vmem:[#allocation2 + $0x88] sm:$0xff]
        %v406 = vld [vmem:[#allocation2 + $0x90] sm:$0xff]
        %v407 = vld [vmem:[#allocation2 + $0x98] sm:$0xff]
        %v408 = vld [vmem:[#allocation2 + $0xa0] sm:$0xff]
        %v409 = vld [vmem:[#allocation2 + $0xa8] sm:$0xff]
        %v410 = vld [vmem:[#allocation2 + $0xb0] sm:$0xff]
        %v411 = vld [vmem:[#allocation2 + $0xb8] sm:$0xff]
        %v412 = vld [vmem:[#allocation2 + $0xc0] sm:$0xff]
        %v413 = vld [vmem:[#allocation2 + $0xc8] sm:$0xff]
        %v414 = vld [vmem:[#allocation2 + $0xd0] sm:$0xff]
        %v415 = vld [vmem:[#allocation2 + $0xd8] sm:$0xff]
        %v416 = vld [vmem:[#allocation2 + $0xe0] sm:$0xff]
        %v417 = vld [vmem:[#allocation2 + $0xe8] sm:$0xff]
        %v418 = vld [vmem:[#allocation2 + $0xf0] sm:$0xff]
        %v419 = vld [vmem:[#allocation2 + $0xf8] sm:$0xff]
        %v420 = vld [vmem:[#allocation2 + $0x100] sm:$0xff]
        %v421 = vld [vmem:[#allocation2 + $0x108] sm:$0xff]
        %v422 = vld [vmem:[#allocation2 + $0x110] sm:$0xff]
        %v423 = vld [vmem:[#allocation2 + $0x118] sm:$0xff]
        %v424 = vld [vmem:[#allocation2 + $0x120] sm:$0xff]
        %v425 = vld [vmem:[#allocation2 + $0x128] sm:$0xff]
        %v426 = vld [vmem:[#allocation2 + $0x130] sm:$0xff]
        %v427 = vld [vmem:[#allocation2 + $0x138] sm:$0xff]
        %v428 = vld [vmem:[#allocation2 + $0x140] sm:$0xff]
        %v429 = vld [vmem:[#allocation2 + $0x148] sm:$0xff]
        %v430 = vld [vmem:[#allocation2 + $0x150] sm:$0xff]
        %v431 = vld [vmem:[#allocation2 + $0x158] sm:$0xff]
        %v432 = vld [vmem:[#allocation2 + $0x160] sm:$0xff]
        %v433 = vld [vmem:[#allocation2 + $0x168] sm:$0xff]
        %v434 = vld [vmem:[#allocation2 + $0x170] sm:$0xff]
        %v435 = vld [vmem:[#allocation2 + $0x178] sm:$0xff]
        %v436 = vld [vmem:[#allocation2 + $0x180] sm:$0xff]
        %v437 = vld [vmem:[#allocation2 + $0x188] sm:$0xff]
        %v438 = vld [vmem:[#allocation2 + $0x190] sm:$0xff]
        %v439 = vld [vmem:[#allocation2 + $0x198] sm:$0xff]
        %v440 = vld [vmem:[#allocation2 + $0x1a0] sm:$0xff]
        %v441 = vld [vmem:[#allocation2 + $0x1a8] sm:$0xff]
        %v442 = vld [vmem:[#allocation2 + $0x1b0] sm:$0xff]
        %v443 = vld [vmem:[#allocation2 + $0x1b8] sm:$0xff]
        %v444 = vld [vmem:[#allocation2 + $0x1c0] sm:$0xff]
        %v445 = vld [vmem:[#allocation2 + $0x1c8] sm:$0xff]
        %v446 = vld [vmem:[#allocation2 + $0x1d0] sm:$0xff]
        %v447 = vld [vmem:[#allocation2 + $0x1d8] sm:$0xff]
        %v448 = vld [vmem:[#allocation2 + $0x1e0] sm:$0xff]
        %v449 = vld [vmem:[#allocation2 + $0x1e8] sm:$0xff]
        %v450 = vld [vmem:[#allocation2 + $0x1f0] sm:$0xff]
        %v451 = vld [vmem:[#allocation2 + $0x1f8] sm:$0xff]
        %v452 = vld [vmem:[#allocation2 + $0x200] sm:$0xff]
        %v453 = vld [vmem:[#allocation2 + $0x208] sm:$0xff]
        %v454 = vld [vmem:[#allocation2 + $0x210] sm:$0xff]
        %v455 = vld [vmem:[#allocation2 + $0x218] sm:$0xff]
        %v456 = vld [vmem:[#allocation2 + $0x220] sm:$0xff]
        %v457 = vld [vmem:[#allocation2 + $0x228] sm:$0xff]
        %v458 = vld [vmem:[#allocation2 + $0x230] sm:$0xff]
        %v459 = vld [vmem:[#allocation2 + $0x238] sm:$0xff]
        %v460 = vld [vmem:[#allocation2 + $0x240] sm:$0xff]
        %v461 = vld [vmem:[#allocation2 + $0x248] sm:$0xff]
        %v462 = vld [vmem:[#allocation2 + $0x250] sm:$0xff]
        %v463 = vld [vmem:[#allocation2 + $0x258] sm:$0xff]
        %v464 = vld [vmem:[#allocation2 + $0x260] sm:$0xff]
        %v465 = vld [vmem:[#allocation2 + $0x268] sm:$0xff]
        %v466 = vld [vmem:[#allocation2 + $0x270] sm:$0xff]
        %v467 = vld [vmem:[#allocation2 + $0x278] sm:$0xff]
        %v468 = vld [vmem:[#allocation2 + $0x280] sm:$0xff]
        %v469 = vld [vmem:[#allocation2 + $0x288] sm:$0xff]
        %v470 = vld [vmem:[#allocation2 + $0x290] sm:$0xff]
        %v471 = vld [vmem:[#allocation2 + $0x298] sm:$0xff]
        %v472 = vld [vmem:[#allocation2 + $0x2a0] sm:$0xff]
        %v473 = vld [vmem:[#allocation2 + $0x2a8] sm:$0xff]
        %v474 = vld [vmem:[#allocation2 + $0x2b0] sm:$0xff]
        %v475 = vld [vmem:[#allocation2 + $0x2b8] sm:$0xff]
        %v476 = vld [vmem:[#allocation2 + $0x2c0] sm:$0xff]
        %v477 = vld [vmem:[#allocation2 + $0x2c8] sm:$0xff]
        %v478 = vld [vmem:[#allocation2 + $0x2d0] sm:$0xff]
        %v479 = vld [vmem:[#allocation2 + $0x2d8] sm:$0xff]
        %v480 = vld [vmem:[#allocation2 + $0x2e0] sm:$0xff]
        %v481 = vld [vmem:[#allocation2 + $0x2e8] sm:$0xff]
        %v482 = vld [vmem:[#allocation2 + $0x2f0] sm:$0xff]
        %v483 = vld [vmem:[#allocation2 + $0x2f8] sm:$0xff]
        %v484 = vld [vmem:[#allocation2 + $0x300] sm:$0xff]
        %v485 = vld [vmem:[#allocation2 + $0x308] sm:$0xff]
        %v486 = vld [vmem:[#allocation2 + $0x310] sm:$0xff]
        %v487 = vld [vmem:[#allocation2 + $0x318] sm:$0xff]
        %v488 = vld [vmem:[#allocation2 + $0x320] sm:$0xff]
        %v489 = vld [vmem:[#allocation2 + $0x328] sm:$0xff]
        %v490 = vld [vmem:[#allocation2 + $0x330] sm:$0xff]
        %v491 = vld [vmem:[#allocation2 + $0x338] sm:$0xff]
        %v492 = vld [vmem:[#allocation2 + $0x340] sm:$0xff]
        %v493 = vld [vmem:[#allocation2 + $0x348] sm:$0xff]
        %v494 = vld [vmem:[#allocation2 + $0x350] sm:$0xff]
        %v495 = vld [vmem:[#allocation2 + $0x358] sm:$0xff]
        %v496 = vld [vmem:[#allocation2 + $0x360] sm:$0xff]
        %v497 = vld [vmem:[#allocation2 + $0x368] sm:$0xff]
        %v498 = vld [vmem:[#allocation2 + $0x370] sm:$0xff]
        %v499 = vld [vmem:[#allocation2 + $0x378] sm:$0xff]
        %v500 = vld [vmem:[#allocation2 + $0x380] sm:$0xff]
        %v501 = vld [vmem:[#allocation2 + $0x388] sm:$0xff]
        %v502 = vld [vmem:[#allocation2 + $0x390] sm:$0xff]
        %v503 = vld [vmem:[#allocation2 + $0x398] sm:$0xff]
        %v504 = vld [vmem:[#allocation2 + $0x3a0] sm:$0xff]
        %v505 = vld [vmem:[#allocation2 + $0x3a8] sm:$0xff]
        %v506 = vld [vmem:[#allocation2 + $0x3b0] sm:$0xff]
        %v507 = vld [vmem:[#allocation2 + $0x3b8] sm:$0xff]
        %v508 = vld [vmem:[#allocation2 + $0x3c0] sm:$0xff]
        %v509 = vld [vmem:[#allocation2 + $0x3c8] sm:$0xff]
        %v510 = vld [vmem:[#allocation2 + $0x3d0] sm:$0xff]
        %v511 = vld [vmem:[#allocation2 + $0x3d8] sm:$0xff]
        %v512 = vld [vmem:[#allocation2 + $0x3e0] sm:$0xff]
        %v513 = vld [vmem:[#allocation2 + $0x3e8] sm:$0xff]
        %v514 = vld [vmem:[#allocation2 + $0x3f0] sm:$0xff]
        %v515 = vld [vmem:[#allocation2 + $0x3f8] sm:$0xff]
        %v516 = vld [vmem:[#allocation2 + $0x400] sm:$0xff]
        %v517 = vld [vmem:[#allocation2 + $0x408] sm:$0xff]
        %v518 = vld [vmem:[#allocation2 + $0x410] sm:$0xff]
        %v519 = vld [vmem:[#allocation2 + $0x418] sm:$0xff]
        %v520 = vld [vmem:[#allocation2 + $0x420] sm:$0xff]
        %v521 = vld [vmem:[#allocation2 + $0x428] sm:$0xff]
        %v522 = vld [vmem:[#allocation2 + $0x430] sm:$0xff]
        %v523 = vld [vmem:[#allocation2 + $0x438] sm:$0xff]
        %v524 = vld [vmem:[#allocation2 + $0x440] sm:$0xff]
        %v525 = vld [vmem:[#allocation2 + $0x448] sm:$0xff]
        %v526 = vld [vmem:[#allocation2 + $0x450] sm:$0xff]
        %v527 = vld [vmem:[#allocation2 + $0x458] sm:$0xff]
        %v528 = vld [vmem:[#allocation2 + $0x460] sm:$0xff]
        %v529 = vld [vmem:[#allocation2 + $0x468] sm:$0xff]
        %v530 = vld [vmem:[#allocation2 + $0x470] sm:$0xff]
        %v531 = vld [vmem:[#allocation2 + $0x478] sm:$0xff]
        %v532 = vld [vmem:[#allocation2 + $0x480] sm:$0xff]
        %v533 = vld [vmem:[#allocation2 + $0x488] sm:$0xff]
        %v534 = vld [vmem:[#allocation2 + $0x490] sm:$0xff]
        %v535 = vld [vmem:[#allocation2 + $0x498] sm:$0xff]
        %v536 = vld [vmem:[#allocation2 + $0x4a0] sm:$0xff]
        %v537 = vld [vmem:[#allocation2 + $0x4a8] sm:$0xff]
        %v538 = vld [vmem:[#allocation2 + $0x4b0] sm:$0xff]
        %v539 = vld [vmem:[#allocation2 + $0x4b8] sm:$0xff]
        %v540 = vld [vmem:[#allocation2 + $0x4c0] sm:$0xff]
        %v541 = vld [vmem:[#allocation2 + $0x4c8] sm:$0xff]
        %v542 = vld [vmem:[#allocation2 + $0x4d0] sm:$0xff]
        %v543 = vld [vmem:[#allocation2 + $0x4d8] sm:$0xff]
        %v544 = vld [vmem:[#allocation2 + $0x4e0] sm:$0xff]
        %v545 = vld [vmem:[#allocation2 + $0x4e8] sm:$0xff]
        %v546 = vld [vmem:[#allocation2 + $0x4f0] sm:$0xff]
        %v547 = vld [vmem:[#allocation2 + $0x4f8] sm:$0xff]
        %v548 = vld [vmem:[#allocation2 + $0x500] sm:$0xff]
        %v549 = vld [vmem:[#allocation2 + $0x508] sm:$0xff]
        %v550 = vld [vmem:[#allocation2 + $0x510] sm:$0xff]
        %v551 = vld [vmem:[#allocation2 + $0x518] sm:$0xff]
        %v552 = vld [vmem:[#allocation2 + $0x520] sm:$0xff]
        %v553 = vld [vmem:[#allocation2 + $0x528] sm:$0xff]
        %v554 = vld [vmem:[#allocation2 + $0x530] sm:$0xff]
        %v555 = vld [vmem:[#allocation2 + $0x538] sm:$0xff]
        %v556 = vld [vmem:[#allocation2 + $0x540] sm:$0xff]
        %v557 = vld [vmem:[#allocation2 + $0x548] sm:$0xff]
        %v558 = vld [vmem:[#allocation2 + $0x550] sm:$0xff]
        %v559 = vld [vmem:[#allocation2 + $0x558] sm:$0xff]
        %v560 = vld [vmem:[#allocation2 + $0x560] sm:$0xff]
        %v561 = vld [vmem:[#allocation2 + $0x568] sm:$0xff]
        %v562 = vld [vmem:[#allocation2 + $0x570] sm:$0xff]
        %v563 = vld [vmem:[#allocation2 + $0x578] sm:$0xff]
        %v564 = vld [vmem:[#allocation2 + $0x580] sm:$0xff]
        %v565 = vld [vmem:[#allocation2 + $0x588] sm:$0xff]
        %v566 = vld [vmem:[#allocation2 + $0x590] sm:$0xff]
        %v567 = vld [vmem:[#allocation2 + $0x598] sm:$0xff]
        %v568 = vld [vmem:[#allocation2 + $0x5a0] sm:$0xff]
        %v569 = vld [vmem:[#allocation2 + $0x5a8] sm:$0xff]
        %v570 = vld [vmem:[#allocation2 + $0x5b0] sm:$0xff]
        %v571 = vld [vmem:[#allocation2 + $0x5b8] sm:$0xff]
        %v572 = vld [vmem:[#allocation2 + $0x5c0] sm:$0xff]
        %v573 = vld [vmem:[#allocation2 + $0x5c8] sm:$0xff]
        %v574 = vld [vmem:[#allocation2 + $0x5d0] sm:$0xff]
        %v575 = vld [vmem:[#allocation2 + $0x5d8] sm:$0xff]
        %v576 = vld [vmem:[#allocation2 + $0x5e0] sm:$0xff]
        %v577 = vld [vmem:[#allocation2 + $0x5e8] sm:$0xff]
        %v578 = vld [vmem:[#allocation2 + $0x5f0] sm:$0xff]
        %v579 = vld [vmem:[#allocation2 + $0x5f8] sm:$0xff]
        %v580 = vld [vmem:[#allocation2 + $0x600] sm:$0xff]
        %v581 = vld [vmem:[#allocation2 + $0x608] sm:$0xff]
        %v582 = vld [vmem:[#allocation2 + $0x610] sm:$0xff]
        %v583 = vld [vmem:[#allocation2 + $0x618] sm:$0xff]
        %v584 = vld [vmem:[#allocation2 + $0x620] sm:$0xff]
        %v585 = vld [vmem:[#allocation2 + $0x628] sm:$0xff]
        %v586 = vld [vmem:[#allocation2 + $0x630] sm:$0xff]
        %v587 = vld [vmem:[#allocation2 + $0x638] sm:$0xff]
        %v588 = vld [vmem:[#allocation2 + $0x640] sm:$0xff]
        %v589 = vld [vmem:[#allocation2 + $0x648] sm:$0xff]
        %v590 = vld [vmem:[#allocation2 + $0x650] sm:$0xff]
        %v591 = vld [vmem:[#allocation2 + $0x658] sm:$0xff]
        %v592 = vld [vmem:[#allocation2 + $0x660] sm:$0xff]
        %v593 = vld [vmem:[#allocation2 + $0x668] sm:$0xff]
        %v594 = vld [vmem:[#allocation2 + $0x670] sm:$0xff]
        %v595 = vld [vmem:[#allocation2 + $0x678] sm:$0xff]
        %v596 = vld [vmem:[#allocation2 + $0x680] sm:$0xff]
        %v597 = vld [vmem:[#allocation2 + $0x688] sm:$0xff]
        %v598 = vld [vmem:[#allocation2 + $0x690] sm:$0xff]
        %v599 = vld [vmem:[#allocation2 + $0x698] sm:$0xff]
        %v600 = vld [vmem:[#allocation2 + $0x6a0] sm:$0xff]
        %v601 = vld [vmem:[#allocation2 + $0x6a8] sm:$0xff]
        %v602 = vld [vmem:[#allocation2 + $0x6b0] sm:$0xff]
        %v603 = vld [vmem:[#allocation2 + $0x6b8] sm:$0xff]
        %v604 = vld [vmem:[#allocation2 + $0x6c0] sm:$0xff]
        %v605 = vld [vmem:[#allocation2 + $0x6c8] sm:$0xff]
        %v606 = vld [vmem:[#allocation2 + $0x6d0] sm:$0xff]
        %v607 = vld [vmem:[#allocation2 + $0x6d8] sm:$0xff]
        %v608 = vld [vmem:[#allocation2 + $0x6e0] sm:$0xff]
        %v609 = vld [vmem:[#allocation2 + $0x6e8] sm:$0xff]
        %v610 = vld [vmem:[#allocation2 + $0x6f0] sm:$0xff]
        %v611 = vld [vmem:[#allocation2 + $0x6f8] sm:$0xff]
        %v612 = vld [vmem:[#allocation2 + $0x700] sm:$0xff]
        %v613 = vld [vmem:[#allocation2 + $0x708] sm:$0xff]
        %v614 = vld [vmem:[#allocation2 + $0x710] sm:$0xff]
        %v615 = vld [vmem:[#allocation2 + $0x718] sm:$0xff]
        %v616 = vld [vmem:[#allocation2 + $0x720] sm:$0xff]
        %v617 = vld [vmem:[#allocation2 + $0x728] sm:$0xff]
        %v618 = vld [vmem:[#allocation2 + $0x730] sm:$0xff]
        %v619 = vld [vmem:[#allocation2 + $0x738] sm:$0xff]
        %v620 = vld [vmem:[#allocation2 + $0x740] sm:$0xff]
        %v621 = vld [vmem:[#allocation2 + $0x748] sm:$0xff]
        %v622 = vld [vmem:[#allocation2 + $0x750] sm:$0xff]
        %v623 = vld [vmem:[#allocation2 + $0x758] sm:$0xff]
        %v624 = vld [vmem:[#allocation2 + $0x760] sm:$0xff]
        %v625 = vld [vmem:[#allocation2 + $0x768] sm:$0xff]
        %v626 = vld [vmem:[#allocation2 + $0x770] sm:$0xff]
        %v627 = vld [vmem:[#allocation2 + $0x778] sm:$0xff]
        %v628 = vld [vmem:[#allocation2 + $0x780] sm:$0xff]
        %v629 = vld [vmem:[#allocation2 + $0x788] sm:$0xff]
        %v630 = vld [vmem:[#allocation2 + $0x790] sm:$0xff]
        %v631 = vld [vmem:[#allocation2 + $0x798] sm:$0xff]
        %v632 = vld [vmem:[#allocation2 + $0x7a0] sm:$0xff]
        %v633 = vld [vmem:[#allocation2 + $0x7a8] sm:$0xff]
        %v634 = vld [vmem:[#allocation2 + $0x7b0] sm:$0xff]
        %v635 = vld [vmem:[#allocation2 + $0x7b8] sm:$0xff]
        %v636 = vld [vmem:[#allocation2 + $0x7c0] sm:$0xff]
        %v637 = vld [vmem:[#allocation2 + $0x7c8] sm:$0xff]
        %v638 = vld [vmem:[#allocation2 + $0x7d0] sm:$0xff]
        %v639 = vld [vmem:[#allocation2 + $0x7d8] sm:$0xff]
        %v640 = vld [vmem:[#allocation2 + $0x7e0] sm:$0xff]
        %v641 = vld [vmem:[#allocation2 + $0x7e8] sm:$0xff]
        %v642 = vld [vmem:[#allocation2 + $0x7f0] sm:$0xff]
        %v643 = vld [vmem:[#allocation2 + $0x7f8] sm:$0xff]
        %v645 = vcombine.high %v387, %v387
        %647 = vmatprep.subr.mxu0 %v389
        %648 = vmatpush1.msra.mxu0 %v388
        %649 = vmatprep.subr.mxu0 %v397
        %650 = vmatpush1.msra.mxu0 %v396
        %651 = vmatprep.subr.mxu0 %v405
        %652 = vmatpush1.msra.mxu0 %v404
        %653 = vmatprep.subr.mxu0 %v413
        %654 = vmatpush1.msra.mxu0 %v412
        %655 = vmatprep.subr.mxu0 %v421
        %656 = vmatpush1.msra.mxu0 %v420
        %657 = vmatprep.subr.mxu0 %v429
        %658 = vmatpush1.msra.mxu0 %v428
        %659 = vmatprep.subr.mxu0 %v437
        %660 = vmatpush1.msra.mxu0 %v436
        %661 = vmatprep.subr.mxu0 %v445
        %662 = vmatpush1.msra.mxu0 %v444
        %663 = vmatprep.subr.mxu0 %v453
        %664 = vmatpush1.msra.mxu0 %v452
        %665 = vmatprep.subr.mxu0 %v461
        %666 = vmatpush1.msra.mxu0 %v460
        %667 = vmatprep.subr.mxu0 %v469
        %668 = vmatpush1.msra.mxu0 %v468
        %669 = vmatprep.subr.mxu0 %v477
        %670 = vmatpush1.msra.mxu0 %v476
        %671 = vmatprep.subr.mxu0 %v485
        %672 = vmatpush1.msra.mxu0 %v484
        %673 = vmatprep.subr.mxu0 %v493
        %674 = vmatpush1.msra.mxu0 %v492
        %675 = vmatprep.subr.mxu0 %v501
        %676 = vmatpush1.msra.mxu0 %v500
        %677 = vmatprep.subr.mxu0 %v509
        %678 = vmatpush1.msra.mxu0 %v508
        %679 = vmatprep.subr.mxu0 %v517
        %680 = vmatpush1.msra.mxu0 %v516
        %681 = vmatprep.subr.mxu0 %v525
        %682 = vmatpush1.msra.mxu0 %v524
        %683 = vmatprep.subr.mxu0 %v533
        %684 = vmatpush1.msra.mxu0 %v532
        %685 = vmatprep.subr.mxu0 %v541
        %686 = vmatpush1.msra.mxu0 %v540
        %687 = vmatprep.subr.mxu0 %v549
        %688 = vmatpush1.msra.mxu0 %v548
        %689 = vmatprep.subr.mxu0 %v557
        %690 = vmatpush1.msra.mxu0 %v556
        %691 = vmatprep.subr.mxu0 %v565
        %692 = vmatpush1.msra.mxu0 %v564
        %693 = vmatprep.subr.mxu0 %v573
        %694 = vmatpush1.msra.mxu0 %v572
        %695 = vmatprep.subr.mxu0 %v581
        %696 = vmatpush1.msra.mxu0 %v580
        %697 = vmatprep.subr.mxu0 %v589
        %698 = vmatpush1.msra.mxu0 %v588
        %699 = vmatprep.subr.mxu0 %v597
        %700 = vmatpush1.msra.mxu0 %v596
        %701 = vmatprep.subr.mxu0 %v605
        %702 = vmatpush1.msra.mxu0 %v604
        %703 = vmatprep.subr.mxu0 %v613
        %704 = vmatpush1.msra.mxu0 %v612
        %705 = vmatprep.subr.mxu0 %v621
        %706 = vmatpush1.msra.mxu0 %v620
        %707 = vmatprep.subr.mxu0 %v629
        %708 = vmatpush1.msra.mxu0 %v628
        %709 = vmatprep.subr.mxu0 %v637
        %710 = vmatpush1.msra.mxu0 %v636
        %711 = vmatprep.mubr.f32.mxu0 %v645
        %712 = vmatmul.mubr.f32.gmra.mrb[0].mxu0 %v387
        %v713 = vpop.f32.mrb[0].mxu0
        %v714 = vadd.f32 0.0, %v713
        %v715 = vpop.f32.mrb[0].mxu0
        %v716 = vadd.f32 0.0, %v715
        %717 = vdwg.mxu0
        %718 = vmatprep.subr.mxu0 %v391
        %719 = vmatpush1.msra.mxu0 %v390
        %720 = vmatprep.subr.mxu0 %v399
        %721 = vmatpush1.msra.mxu0 %v398
        %722 = vmatprep.subr.mxu0 %v407
        %723 = vmatpush1.msra.mxu0 %v406
        %724 = vmatprep.subr.mxu0 %v415
        %725 = vmatpush1.msra.mxu0 %v414
        %726 = vmatprep.subr.mxu0 %v423
        %727 = vmatpush1.msra.mxu0 %v422
        %728 = vmatprep.subr.mxu0 %v431
        %729 = vmatpush1.msra.mxu0 %v430
        %730 = vmatprep.subr.mxu0 %v439
        %731 = vmatpush1.msra.mxu0 %v438
        %732 = vmatprep.subr.mxu0 %v447
        %733 = vmatpush1.msra.mxu0 %v446
        %734 = vmatprep.subr.mxu0 %v455
        %735 = vmatpush1.msra.mxu0 %v454
        %736 = vmatprep.subr.mxu0 %v463
        %737 = vmatpush1.msra.mxu0 %v462
        %738 = vmatprep.subr.mxu0 %v471
        %739 = vmatpush1.msra.mxu0 %v470
        %740 = vmatprep.subr.mxu0 %v479
        %741 = vmatpush1.msra.mxu0 %v478
        %742 = vmatprep.subr.mxu0 %v487
        %743 = vmatpush1.msra.mxu0 %v486
        %744 = vmatprep.subr.mxu0 %v495
        %745 = vmatpush1.msra.mxu0 %v494
        %746 = vmatprep.subr.mxu0 %v503
        %747 = vmatpush1.msra.mxu0 %v502
        %748 = vmatprep.subr.mxu0 %v511
        %749 = vmatpush1.msra.mxu0 %v510
        %750 = vmatprep.subr.mxu0 %v519
        %751 = vmatpush1.msra.mxu0 %v518
        %752 = vmatprep.subr.mxu0 %v527
        %753 = vmatpush1.msra.mxu0 %v526
        %754 = vmatprep.subr.mxu0 %v535
        %755 = vmatpush1.msra.mxu0 %v534
        %756 = vmatprep.subr.mxu0 %v543
        %757 = vmatpush1.msra.mxu0 %v542
        %758 = vmatprep.subr.mxu0 %v551
        %759 = vmatpush1.msra.mxu0 %v550
        %760 = vmatprep.subr.mxu0 %v559
        %761 = vmatpush1.msra.mxu0 %v558
        %762 = vmatprep.subr.mxu0 %v567
        %763 = vmatpush1.msra.mxu0 %v566
        %764 = vmatprep.subr.mxu0 %v575
        %765 = vmatpush1.msra.mxu0 %v574
        %766 = vmatprep.subr.mxu0 %v583
        %767 = vmatpush1.msra.mxu0 %v582
        %768 = vmatprep.subr.mxu0 %v591
        %769 = vmatpush1.msra.mxu0 %v590
        %770 = vmatprep.subr.mxu0 %v599
        %771 = vmatpush1.msra.mxu0 %v598
        %772 = vmatprep.subr.mxu0 %v607
        %773 = vmatpush1.msra.mxu0 %v606
        %774 = vmatprep.subr.mxu0 %v615
        %775 = vmatpush1.msra.mxu0 %v614
        %776 = vmatprep.subr.mxu0 %v623
        %777 = vmatpush1.msra.mxu0 %v622
        %778 = vmatprep.subr.mxu0 %v631
        %779 = vmatpush1.msra.mxu0 %v630
        %780 = vmatprep.subr.mxu0 %v639
        %781 = vmatpush1.msra.mxu0 %v638
        %782 = vmatprep.mubr.f32.mxu0 %v645
        %783 = vmatmul.mubr.f32.gmra.mrb[0].mxu0 %v387
        %v784 = vpop.f32.mrb[0].mxu0
        %v785 = vadd.f32 0.0, %v784
        %v786 = vpop.f32.mrb[0].mxu0
        %v787 = vadd.f32 0.0, %v786
        %788 = vdwg.mxu0
        %789 = vmatprep.subr.mxu0 %v393
        %790 = vmatpush1.msra.mxu0 %v392
        %791 = vmatprep.subr.mxu0 %v401
        %792 = vmatpush1.msra.mxu0 %v400
        %793 = vmatprep.subr.mxu0 %v409
        %794 = vmatpush1.msra.mxu0 %v408
        %795 = vmatprep.subr.mxu0 %v417
        %796 = vmatpush1.msra.mxu0 %v416
        %797 = vmatprep.subr.mxu0 %v425
        %798 = vmatpush1.msra.mxu0 %v424
        %799 = vmatprep.subr.mxu0 %v433
        %800 = vmatpush1.msra.mxu0 %v432
        %801 = vmatprep.subr.mxu0 %v441
        %802 = vmatpush1.msra.mxu0 %v440
        %803 = vmatprep.subr.mxu0 %v449
        %804 = vmatpush1.msra.mxu0 %v448
        %805 = vmatprep.subr.mxu0 %v457
        %806 = vmatpush1.msra.mxu0 %v456
        %807 = vmatprep.subr.mxu0 %v465
        %808 = vmatpush1.msra.mxu0 %v464
        %809 = vmatprep.subr.mxu0 %v473
        %810 = vmatpush1.msra.mxu0 %v472
        %811 = vmatprep.subr.mxu0 %v481
        %812 = vmatpush1.msra.mxu0 %v480
        %813 = vmatprep.subr.mxu0 %v489
        %814 = vmatpush1.msra.mxu0 %v488
        %815 = vmatprep.subr.mxu0 %v497
        %816 = vmatpush1.msra.mxu0 %v496
        %817 = vmatprep.subr.mxu0 %v505
        %818 = vmatpush1.msra.mxu0 %v504
        %819 = vmatprep.subr.mxu0 %v513
        %820 = vmatpush1.msra.mxu0 %v512
        %821 = vmatprep.subr.mxu0 %v521
        %822 = vmatpush1.msra.mxu0 %v520
        %823 = vmatprep.subr.mxu0 %v529
        %824 = vmatpush1.msra.mxu0 %v528
        %825 = vmatprep.subr.mxu0 %v537
        %826 = vmatpush1.msra.mxu0 %v536
        %827 = vmatprep.subr.mxu0 %v545
        %828 = vmatpush1.msra.mxu0 %v544
        %829 = vmatprep.subr.mxu0 %v553
        %830 = vmatpush1.msra.mxu0 %v552
        %831 = vmatprep.subr.mxu0 %v561
        %832 = vmatpush1.msra.mxu0 %v560
        %833 = vmatprep.subr.mxu0 %v569
        %834 = vmatpush1.msra.mxu0 %v568
        %835 = vmatprep.subr.mxu0 %v577
        %836 = vmatpush1.msra.mxu0 %v576
        %837 = vmatprep.subr.mxu0 %v585
        %838 = vmatpush1.msra.mxu0 %v584
        %839 = vmatprep.subr.mxu0 %v593
        %840 = vmatpush1.msra.mxu0 %v592
        %841 = vmatprep.subr.mxu0 %v601
        %842 = vmatpush1.msra.mxu0 %v600
        %843 = vmatprep.subr.mxu0 %v609
        %844 = vmatpush1.msra.mxu0 %v608
        %845 = vmatprep.subr.mxu0 %v617
        %846 = vmatpush1.msra.mxu0 %v616
        %847 = vmatprep.subr.mxu0 %v625
        %848 = vmatpush1.msra.mxu0 %v624
        %849 = vmatprep.subr.mxu0 %v633
        %850 = vmatpush1.msra.mxu0 %v632
        %851 = vmatprep.subr.mxu0 %v641
        %852 = vmatpush1.msra.mxu0 %v640
        %853 = vmatprep.mubr.f32.mxu0 %v645
        %854 = vmatmul.mubr.f32.gmra.mrb[0].mxu0 %v387
        %v855 = vpop.f32.mrb[0].mxu0
        %v856 = vadd.f32 0.0, %v855
        %v857 = vpop.f32.mrb[0].mxu0
        %v858 = vadd.f32 0.0, %v857
        %859 = vdwg.mxu0
        %860 = vmatprep.subr.mxu0 %v395
        %861 = vmatpush1.msra.mxu0 %v394
        %862 = vmatprep.subr.mxu0 %v403
        %863 = vmatpush1.msra.mxu0 %v402
        %864 = vmatprep.subr.mxu0 %v411
        %865 = vmatpush1.msra.mxu0 %v410
        %866 = vmatprep.subr.mxu0 %v419
        %867 = vmatpush1.msra.mxu0 %v418
        %868 = vmatprep.subr.mxu0 %v427
        %869 = vmatpush1.msra.mxu0 %v426
        %870 = vmatprep.subr.mxu0 %v435
        %871 = vmatpush1.msra.mxu0 %v434
        %872 = vmatprep.subr.mxu0 %v443
        %873 = vmatpush1.msra.mxu0 %v442
        %874 = vmatprep.subr.mxu0 %v451
        %875 = vmatpush1.msra.mxu0 %v450
        %876 = vmatprep.subr.mxu0 %v459
        %877 = vmatpush1.msra.mxu0 %v458
        %878 = vmatprep.subr.mxu0 %v467
        %879 = vmatpush1.msra.mxu0 %v466
        %880 = vmatprep.subr.mxu0 %v475
        %881 = vmatpush1.msra.mxu0 %v474
        %882 = vmatprep.subr.mxu0 %v483
        %883 = vmatpush1.msra.mxu0 %v482
        %884 = vmatprep.subr.mxu0 %v491
        %885 = vmatpush1.msra.mxu0 %v490
        %886 = vmatprep.subr.mxu0 %v499
        %887 = vmatpush1.msra.mxu0 %v498
        %888 = vmatprep.subr.mxu0 %v507
        %889 = vmatpush1.msra.mxu0 %v506
        %890 = vmatprep.subr.mxu0 %v515
        %891 = vmatpush1.msra.mxu0 %v514
        %892 = vmatprep.subr.mxu0 %v523
        %893 = vmatpush1.msra.mxu0 %v522
        %894 = vmatprep.subr.mxu0 %v531
        %895 = vmatpush1.msra.mxu0 %v530
        %896 = vmatprep.subr.mxu0 %v539
        %897 = vmatpush1.msra.mxu0 %v538
        %898 = vmatprep.subr.mxu0 %v547
        %899 = vmatpush1.msra.mxu0 %v546
        %900 = vmatprep.subr.mxu0 %v555
        %901 = vmatpush1.msra.mxu0 %v554
        %902 = vmatprep.subr.mxu0 %v563
        %903 = vmatpush1.msra.mxu0 %v562
        %904 = vmatprep.subr.mxu0 %v571
        %905 = vmatpush1.msra.mxu0 %v570
        %906 = vmatprep.subr.mxu0 %v579
        %907 = vmatpush1.msra.mxu0 %v578
        %908 = vmatprep.subr.mxu0 %v587
        %909 = vmatpush1.msra.mxu0 %v586
        %910 = vmatprep.subr.mxu0 %v595
        %911 = vmatpush1.msra.mxu0 %v594
        %912 = vmatprep.subr.mxu0 %v603
        %913 = vmatpush1.msra.mxu0 %v602
        %914 = vmatprep.subr.mxu0 %v611
        %915 = vmatpush1.msra.mxu0 %v610
        %916 = vmatprep.subr.mxu0 %v619
        %917 = vmatpush1.msra.mxu0 %v618
        %918 = vmatprep.subr.mxu0 %v627
        %919 = vmatpush1.msra.mxu0 %v626
        %920 = vmatprep.subr.mxu0 %v635
        %921 = vmatpush1.msra.mxu0 %v634
        %922 = vmatprep.subr.mxu0 %v643
        %923 = vmatpush1.msra.mxu0 %v642
        %924 = vmatprep.mubr.f32.mxu0 %v645
        %925 = vmatmul.mubr.f32.gmra.mrb[0].mxu0 %v387
        %v926 = vpop.f32.mrb[0].mxu0
        %v927 = vadd.f32 0.0, %v926
        %v928 = vpop.f32.mrb[0].mxu0
        %v929 = vadd.f32 0.0, %v928
        %930 = vdwg.mxu0
        %v939 = vrot.slane %v714, 4
        %v940 = vrot.slane %v716, 4
        %v941 = vrot.slane %v785, 4
        %v942 = vrot.slane %v787, 4
        %v943 = vrot.slane %v856, 4
        %v944 = vrot.slane %v858, 4
        %v945 = vrot.slane %v927, 4
        %v946 = vrot.slane %v929, 4
        %955 = vst [vmem:[%s362] sm:$0xf0] %v939
        %956 = vst [vmem:[%s362 + $0x8] sm:$0xf0] %v940
        %957 = vst [vmem:[%s362 + $0x10] sm:$0xf0] %v941
        %958 = vst [vmem:[%s362 + $0x18] sm:$0xf0] %v942
        %959 = vst [vmem:[%s362 + $0x20] sm:$0xf0] %v943
        %960 = vst [vmem:[%s362 + $0x28] sm:$0xf0] %v944
        %961 = vst [vmem:[%s362 + $0x30] sm:$0xf0] %v945
        %962 = vst [vmem:[%s362 + $0x38] sm:$0xf0] %v946
        %v963 = vld [vmem:[%s353] sm:$0xf]
        %v964 = vld [vmem:[%s5] sm:$0xff]
        %v965 = vld [vmem:[%s5 + $0x8] sm:$0xff]
        %v966 = vld [vmem:[%s5 + $0x10] sm:$0xff]
        %v967 = vld [vmem:[%s5 + $0x18] sm:$0xff]
        %v968 = vld [vmem:[%s5 + $0x20] sm:$0xff]
        %v969 = vld [vmem:[%s5 + $0x28] sm:$0xff]
        %v970 = vld [vmem:[%s5 + $0x30] sm:$0xff]
        %v971 = vld [vmem:[%s5 + $0x38] sm:$0xff]
        %v972 = vld [vmem:[%s5 + $0x40] sm:$0xff]
        %v973 = vld [vmem:[%s5 + $0x48] sm:$0xff]
        %v974 = vld [vmem:[%s5 + $0x50] sm:$0xff]
        %v975 = vld [vmem:[%s5 + $0x58] sm:$0xff]
        %v976 = vld [vmem:[%s5 + $0x60] sm:$0xff]
        %v977 = vld [vmem:[%s5 + $0x68] sm:$0xff]
        %v978 = vld [vmem:[%s5 + $0x70] sm:$0xff]
        %v979 = vld [vmem:[%s5 + $0x78] sm:$0xff]
        %v980 = vld [vmem:[%s5 + $0x80] sm:$0xff]
        %v981 = vld [vmem:[%s5 + $0x88] sm:$0xff]
        %v982 = vld [vmem:[%s5 + $0x90] sm:$0xff]
        %v983 = vld [vmem:[%s5 + $0x98] sm:$0xff]
        %v984 = vld [vmem:[%s5 + $0xa0] sm:$0xff]
        %v985 = vld [vmem:[%s5 + $0xa8] sm:$0xff]
        %v986 = vld [vmem:[%s5 + $0xb0] sm:$0xff]
        %v987 = vld [vmem:[%s5 + $0xb8] sm:$0xff]
        %v988 = vld [vmem:[%s5 + $0xc0] sm:$0xff]
        %v989 = vld [vmem:[%s5 + $0xc8] sm:$0xff]
        %v990 = vld [vmem:[%s5 + $0xd0] sm:$0xff]
        %v991 = vld [vmem:[%s5 + $0xd8] sm:$0xff]
        %v992 = vld [vmem:[%s5 + $0xe0] sm:$0xff]
        %v993 = vld [vmem:[%s5 + $0xe8] sm:$0xff]
        %v994 = vld [vmem:[%s5 + $0xf0] sm:$0xff]
        %v995 = vld [vmem:[%s5 + $0xf8] sm:$0xff]
        %v996 = vld [vmem:[%s5 + $0x100] sm:$0xff]
        %v997 = vld [vmem:[%s5 + $0x108] sm:$0xff]
        %v998 = vld [vmem:[%s5 + $0x110] sm:$0xff]
        %v999 = vld [vmem:[%s5 + $0x118] sm:$0xff]
        %v1000 = vld [vmem:[%s5 + $0x120] sm:$0xff]
        %v1001 = vld [vmem:[%s5 + $0x128] sm:$0xff]
        %v1002 = vld [vmem:[%s5 + $0x130] sm:$0xff]
        %v1003 = vld [vmem:[%s5 + $0x138] sm:$0xff]
        %v1004 = vld [vmem:[%s5 + $0x140] sm:$0xff]
        %v1005 = vld [vmem:[%s5 + $0x148] sm:$0xff]
        %v1006 = vld [vmem:[%s5 + $0x150] sm:$0xff]
        %v1007 = vld [vmem:[%s5 + $0x158] sm:$0xff]
        %v1008 = vld [vmem:[%s5 + $0x160] sm:$0xff]
        %v1009 = vld [vmem:[%s5 + $0x168] sm:$0xff]
        %v1010 = vld [vmem:[%s5 + $0x170] sm:$0xff]
        %v1011 = vld [vmem:[%s5 + $0x178] sm:$0xff]
        %v1012 = vld [vmem:[%s5 + $0x180] sm:$0xff]
        %v1013 = vld [vmem:[%s5 + $0x188] sm:$0xff]
        %v1014 = vld [vmem:[%s5 + $0x190] sm:$0xff]
        %v1015 = vld [vmem:[%s5 + $0x198] sm:$0xff]
        %v1016 = vld [vmem:[%s5 + $0x1a0] sm:$0xff]
        %v1017 = vld [vmem:[%s5 + $0x1a8] sm:$0xff]
        %v1018 = vld [vmem:[%s5 + $0x1b0] sm:$0xff]
        %v1019 = vld [vmem:[%s5 + $0x1b8] sm:$0xff]
        %v1020 = vld [vmem:[%s5 + $0x1c0] sm:$0xff]
        %v1021 = vld [vmem:[%s5 + $0x1c8] sm:$0xff]
        %v1022 = vld [vmem:[%s5 + $0x1d0] sm:$0xff]
        %v1023 = vld [vmem:[%s5 + $0x1d8] sm:$0xff]
        %v1024 = vld [vmem:[%s5 + $0x1e0] sm:$0xff]
        %v1025 = vld [vmem:[%s5 + $0x1e8] sm:$0xff]
        %v1026 = vld [vmem:[%s5 + $0x1f0] sm:$0xff]
        %v1027 = vld [vmem:[%s5 + $0x1f8] sm:$0xff]
        %vm1028 = vcmask 523264
        %v1030 = vsel %vm1028, %v963, 0
        %1032 = vmatprep.subr.mxu0 %v965
        %1033 = vmatpush1.msra.mxu0 %v964
        %1034 = vmatprep.subr.mxu0 %v973
        %1035 = vmatpush1.msra.mxu0 %v972
        %1036 = vmatprep.subr.mxu0 %v981
        %1037 = vmatpush1.msra.mxu0 %v980
        %1038 = vmatprep.subr.mxu0 %v989
        %1039 = vmatpush1.msra.mxu0 %v988
        %1040 = vmatprep.subr.mxu0 %v997
        %1041 = vmatpush1.msra.mxu0 %v996
        %1042 = vmatprep.subr.mxu0 %v1005
        %1043 = vmatpush1.msra.mxu0 %v1004
        %1044 = vmatprep.subr.mxu0 %v1013
        %1045 = vmatpush1.msra.mxu0 %v1012
        %1046 = vmatprep.subr.mxu0 %v1021
        %1047 = vmatpush1.msra.mxu0 %v1020
        %1048 = vmatprep.subr.mxu0 0.0
        %1049 = vmatpush1.msra.mxu0 0.0
        %1050 = vmatprep.subr.mxu0 0.0
        %1051 = vmatpush1.msra.mxu0 0.0
        %1052 = vmatprep.subr.mxu0 0.0
        %1053 = vmatpush1.msra.mxu0 0.0
        %1054 = vmatprep.subr.mxu0 0.0
        %1055 = vmatpush1.msra.mxu0 0.0
        %1056 = vmatprep.subr.mxu0 0.0
        %1057 = vmatpush1.msra.mxu0 0.0
        %1058 = vmatprep.subr.mxu0 0.0
        %1059 = vmatpush1.msra.mxu0 0.0
        %1060 = vmatprep.subr.mxu0 0.0
        %1061 = vmatpush1.msra.mxu0 0.0
        %1062 = vmatprep.subr.mxu0 0.0
        %1063 = vmatpush1.msra.mxu0 0.0
        %1064 = vmatprep.subr.mxu0 0.0
        %1065 = vmatpush1.msra.mxu0 0.0
        %1066 = vmatprep.subr.mxu0 0.0
        %1067 = vmatpush1.msra.mxu0 0.0
        %1068 = vmatprep.subr.mxu0 0.0
        %1069 = vmatpush1.msra.mxu0 0.0
        %1070 = vmatprep.subr.mxu0 0.0
        %1071 = vmatpush1.msra.mxu0 0.0
        %1072 = vmatprep.subr.mxu0 0.0
        %1073 = vmatpush1.msra.mxu0 0.0
        %1074 = vmatprep.subr.mxu0 0.0
        %1075 = vmatpush1.msra.mxu0 0.0
        %1076 = vmatprep.subr.mxu0 0.0
        %1077 = vmatpush1.msra.mxu0 0.0
        %1078 = vmatprep.subr.mxu0 0.0
        %1079 = vmatpush1.msra.mxu0 0.0
        %1080 = vmatprep.subr.mxu0 0.0
        %1081 = vmatpush1.msra.mxu0 0.0
        %1082 = vmatprep.subr.mxu0 0.0
        %1083 = vmatpush1.msra.mxu0 0.0
        %1084 = vmatprep.subr.mxu0 0.0
        %1085 = vmatpush1.msra.mxu0 0.0
        %1086 = vmatprep.subr.mxu0 0.0
        %1087 = vmatpush1.msra.mxu0 0.0
        %1088 = vmatprep.subr.mxu0 0.0
        %1089 = vmatpush1.msra.mxu0 0.0
        %1090 = vmatprep.subr.mxu0 0.0
        %1091 = vmatpush1.msra.mxu0 0.0
        %1092 = vmatprep.subr.mxu0 0.0
        %1093 = vmatpush1.msra.mxu0 0.0
        %1094 = vmatprep.subr.mxu0 0.0
        %1095 = vmatpush1.msra.mxu0 0.0
        %1096 = vmatprep.mubr.f32.mxu0 0.0
        %1097 = vmatmul.mubr.f32.gmra.mrb[0].mxu0 %v1030
        %v1098 = vpop.f32.mrb[0].mxu0
        %v1099 = vadd.f32 0.0, %v1098
        %v1100 = vpop.f32.mrb[0].mxu0
        %v1101 = vadd.f32 0.0, %v1100
        %1102 = vdwg.mxu0
        %1103 = vmatprep.subr.mxu0 %v967
        %1104 = vmatpush1.msra.mxu0 %v966
        %1105 = vmatprep.subr.mxu0 %v975
        %1106 = vmatpush1.msra.mxu0 %v974
        %1107 = vmatprep.subr.mxu0 %v983
        %1108 = vmatpush1.msra.mxu0 %v982
        %1109 = vmatprep.subr.mxu0 %v991
        %1110 = vmatpush1.msra.mxu0 %v990
        %1111 = vmatprep.subr.mxu0 %v999
        %1112 = vmatpush1.msra.mxu0 %v998
        %1113 = vmatprep.subr.mxu0 %v1007
        %1114 = vmatpush1.msra.mxu0 %v1006
        %1115 = vmatprep.subr.mxu0 %v1015
        %1116 = vmatpush1.msra.mxu0 %v1014
        %1117 = vmatprep.subr.mxu0 %v1023
        %1118 = vmatpush1.msra.mxu0 %v1022
        %1119 = vmatprep.subr.mxu0 0.0
        %1120 = vmatpush1.msra.mxu0 0.0
        %1121 = vmatprep.subr.mxu0 0.0
        %1122 = vmatpush1.msra.mxu0 0.0
        %1123 = vmatprep.subr.mxu0 0.0
        %1124 = vmatpush1.msra.mxu0 0.0
        %1125 = vmatprep.subr.mxu0 0.0
        %1126 = vmatpush1.msra.mxu0 0.0
        %1127 = vmatprep.subr.mxu0 0.0
        %1128 = vmatpush1.msra.mxu0 0.0
        %1129 = vmatprep.subr.mxu0 0.0
        %1130 = vmatpush1.msra.mxu0 0.0
        %1131 = vmatprep.subr.mxu0 0.0
        %1132 = vmatpush1.msra.mxu0 0.0
        %1133 = vmatprep.subr.mxu0 0.0
        %1134 = vmatpush1.msra.mxu0 0.0
        %1135 = vmatprep.subr.mxu0 0.0
        %1136 = vmatpush1.msra.mxu0 0.0
        %1137 = vmatprep.subr.mxu0 0.0
        %1138 = vmatpush1.msra.mxu0 0.0
        %1139 = vmatprep.subr.mxu0 0.0
        %1140 = vmatpush1.msra.mxu0 0.0
        %1141 = vmatprep.subr.mxu0 0.0
        %1142 = vmatpush1.msra.mxu0 0.0
        %1143 = vmatprep.subr.mxu0 0.0
        %1144 = vmatpush1.msra.mxu0 0.0
        %1145 = vmatprep.subr.mxu0 0.0
        %1146 = vmatpush1.msra.mxu0 0.0
        %1147 = vmatprep.subr.mxu0 0.0
        %1148 = vmatpush1.msra.mxu0 0.0
        %1149 = vmatprep.subr.mxu0 0.0
        %1150 = vmatpush1.msra.mxu0 0.0
        %1151 = vmatprep.subr.mxu0 0.0
        %1152 = vmatpush1.msra.mxu0 0.0
        %1153 = vmatprep.subr.mxu0 0.0
        %1154 = vmatpush1.msra.mxu0 0.0
        %1155 = vmatprep.subr.mxu0 0.0
        %1156 = vmatpush1.msra.mxu0 0.0
        %1157 = vmatprep.subr.mxu0 0.0
        %1158 = vmatpush1.msra.mxu0 0.0
        %1159 = vmatprep.subr.mxu0 0.0
        %1160 = vmatpush1.msra.mxu0 0.0
        %1161 = vmatprep.subr.mxu0 0.0
        %1162 = vmatpush1.msra.mxu0 0.0
        %1163 = vmatprep.subr.mxu0 0.0
        %1164 = vmatpush1.msra.mxu0 0.0
        %1165 = vmatprep.subr.mxu0 0.0
        %1166 = vmatpush1.msra.mxu0 0.0
        %1167 = vmatprep.mubr.f32.mxu0 0.0
        %1168 = vmatmul.mubr.f32.gmra.mrb[0].mxu0 %v1030
        %v1169 = vpop.f32.mrb[0].mxu0
        %v1170 = vadd.f32 0.0, %v1169
        %v1171 = vpop.f32.mrb[0].mxu0
        %v1172 = vadd.f32 0.0, %v1171
        %1173 = vdwg.mxu0
        %1174 = vmatprep.subr.mxu0 %v969
        %1175 = vmatpush1.msra.mxu0 %v968
        %1176 = vmatprep.subr.mxu0 %v977
        %1177 = vmatpush1.msra.mxu0 %v976
        %1178 = vmatprep.subr.mxu0 %v985
        %1179 = vmatpush1.msra.mxu0 %v984
        %1180 = vmatprep.subr.mxu0 %v993
        %1181 = vmatpush1.msra.mxu0 %v992
        %1182 = vmatprep.subr.mxu0 %v1001
        %1183 = vmatpush1.msra.mxu0 %v1000
        %1184 = vmatprep.subr.mxu0 %v1009
        %1185 = vmatpush1.msra.mxu0 %v1008
        %1186 = vmatprep.subr.mxu0 %v1017
        %1187 = vmatpush1.msra.mxu0 %v1016
        %1188 = vmatprep.subr.mxu0 %v1025
        %1189 = vmatpush1.msra.mxu0 %v1024
        %1190 = vmatprep.subr.mxu0 0.0
        %1191 = vmatpush1.msra.mxu0 0.0
        %1192 = vmatprep.subr.mxu0 0.0
        %1193 = vmatpush1.msra.mxu0 0.0
        %1194 = vmatprep.subr.mxu0 0.0
        %1195 = vmatpush1.msra.mxu0 0.0
        %1196 = vmatprep.subr.mxu0 0.0
        %1197 = vmatpush1.msra.mxu0 0.0
        %1198 = vmatprep.subr.mxu0 0.0
        %1199 = vmatpush1.msra.mxu0 0.0
        %1200 = vmatprep.subr.mxu0 0.0
        %1201 = vmatpush1.msra.mxu0 0.0
        %1202 = vmatprep.subr.mxu0 0.0
        %1203 = vmatpush1.msra.mxu0 0.0
        %1204 = vmatprep.subr.mxu0 0.0
        %1205 = vmatpush1.msra.mxu0 0.0
        %1206 = vmatprep.subr.mxu0 0.0
        %1207 = vmatpush1.msra.mxu0 0.0
        %1208 = vmatprep.subr.mxu0 0.0
        %1209 = vmatpush1.msra.mxu0 0.0
        %1210 = vmatprep.subr.mxu0 0.0
        %1211 = vmatpush1.msra.mxu0 0.0
        %1212 = vmatprep.subr.mxu0 0.0
        %1213 = vmatpush1.msra.mxu0 0.0
        %1214 = vmatprep.subr.mxu0 0.0
        %1215 = vmatpush1.msra.mxu0 0.0
        %1216 = vmatprep.subr.mxu0 0.0
        %1217 = vmatpush1.msra.mxu0 0.0
        %1218 = vmatprep.subr.mxu0 0.0
        %1219 = vmatpush1.msra.mxu0 0.0
        %1220 = vmatprep.subr.mxu0 0.0
        %1221 = vmatpush1.msra.mxu0 0.0
        %1222 = vmatprep.subr.mxu0 0.0
        %1223 = vmatpush1.msra.mxu0 0.0
        %1224 = vmatprep.subr.mxu0 0.0
        %1225 = vmatpush1.msra.mxu0 0.0
        %1226 = vmatprep.subr.mxu0 0.0
        %1227 = vmatpush1.msra.mxu0 0.0
        %1228 = vmatprep.subr.mxu0 0.0
        %1229 = vmatpush1.msra.mxu0 0.0
        %1230 = vmatprep.subr.mxu0 0.0
        %1231 = vmatpush1.msra.mxu0 0.0
        %1232 = vmatprep.subr.mxu0 0.0
        %1233 = vmatpush1.msra.mxu0 0.0
        %1234 = vmatprep.subr.mxu0 0.0
        %1235 = vmatpush1.msra.mxu0 0.0
        %1236 = vmatprep.subr.mxu0 0.0
        %1237 = vmatpush1.msra.mxu0 0.0
        %1238 = vmatprep.mubr.f32.mxu0 0.0
        %1239 = vmatmul.mubr.f32.gmra.mrb[0].mxu0 %v1030
        %v1240 = vpop.f32.mrb[0].mxu0
        %v1241 = vadd.f32 0.0, %v1240
        %v1242 = vpop.f32.mrb[0].mxu0
        %v1243 = vadd.f32 0.0, %v1242
        %1244 = vdwg.mxu0
        %1245 = vmatprep.subr.mxu0 %v971
        %1246 = vmatpush1.msra.mxu0 %v970
        %1247 = vmatprep.subr.mxu0 %v979
        %1248 = vmatpush1.msra.mxu0 %v978
        %1249 = vmatprep.subr.mxu0 %v987
        %1250 = vmatpush1.msra.mxu0 %v986
        %1251 = vmatprep.subr.mxu0 %v995
        %1252 = vmatpush1.msra.mxu0 %v994
        %1253 = vmatprep.subr.mxu0 %v1003
        %1254 = vmatpush1.msra.mxu0 %v1002
        %1255 = vmatprep.subr.mxu0 %v1011
        %1256 = vmatpush1.msra.mxu0 %v1010
        %1257 = vmatprep.subr.mxu0 %v1019
        %1258 = vmatpush1.msra.mxu0 %v1018
        %1259 = vmatprep.subr.mxu0 %v1027
        %1260 = vmatpush1.msra.mxu0 %v1026
        %1261 = vmatprep.subr.mxu0 0.0
        %1262 = vmatpush1.msra.mxu0 0.0
        %1263 = vmatprep.subr.mxu0 0.0
        %1264 = vmatpush1.msra.mxu0 0.0
        %1265 = vmatprep.subr.mxu0 0.0
        %1266 = vmatpush1.msra.mxu0 0.0
        %1267 = vmatprep.subr.mxu0 0.0
        %1268 = vmatpush1.msra.mxu0 0.0
        %1269 = vmatprep.subr.mxu0 0.0
        %1270 = vmatpush1.msra.mxu0 0.0
        %1271 = vmatprep.subr.mxu0 0.0
        %1272 = vmatpush1.msra.mxu0 0.0
        %1273 = vmatprep.subr.mxu0 0.0
        %1274 = vmatpush1.msra.mxu0 0.0
        %1275 = vmatprep.subr.mxu0 0.0
        %1276 = vmatpush1.msra.mxu0 0.0
        %1277 = vmatprep.subr.mxu0 0.0
        %1278 = vmatpush1.msra.mxu0 0.0
        %1279 = vmatprep.subr.mxu0 0.0
        %1280 = vmatpush1.msra.mxu0 0.0
        %1281 = vmatprep.subr.mxu0 0.0
        %1282 = vmatpush1.msra.mxu0 0.0
        %1283 = vmatprep.subr.mxu0 0.0
        %1284 = vmatpush1.msra.mxu0 0.0
        %1285 = vmatprep.subr.mxu0 0.0
        %1286 = vmatpush1.msra.mxu0 0.0
        %1287 = vmatprep.subr.mxu0 0.0
        %1288 = vmatpush1.msra.mxu0 0.0
        %1289 = vmatprep.subr.mxu0 0.0
        %1290 = vmatpush1.msra.mxu0 0.0
        %1291 = vmatprep.subr.mxu0 0.0
        %1292 = vmatpush1.msra.mxu0 0.0
        %1293 = vmatprep.subr.mxu0 0.0
        %1294 = vmatpush1.msra.mxu0 0.0
        %1295 = vmatprep.subr.mxu0 0.0
        %1296 = vmatpush1.msra.mxu0 0.0
        %1297 = vmatprep.subr.mxu0 0.0
        %1298 = vmatpush1.msra.mxu0 0.0
        %1299 = vmatprep.subr.mxu0 0.0
        %1300 = vmatpush1.msra.mxu0 0.0
        %1301 = vmatprep.subr.mxu0 0.0
        %1302 = vmatpush1.msra.mxu0 0.0
        %1303 = vmatprep.subr.mxu0 0.0
        %1304 = vmatpush1.msra.mxu0 0.0
        %1305 = vmatprep.subr.mxu0 0.0
        %1306 = vmatpush1.msra.mxu0 0.0
        %1307 = vmatprep.subr.mxu0 0.0
        %1308 = vmatpush1.msra.mxu0 0.0
        %1309 = vmatprep.mubr.f32.mxu0 0.0
        %1310 = vmatmul.mubr.f32.gmra.mrb[0].mxu0 %v1030
        %v1311 = vpop.f32.mrb[0].mxu0
        %v1312 = vadd.f32 0.0, %v1311
        %v1313 = vpop.f32.mrb[0].mxu0
        %v1314 = vadd.f32 0.0, %v1313
        %1315 = vdwg.mxu0
        %1316 = vst [vmem:[%s362 + $0x40] sm:$0xf] %v1099
        %1317 = vst [vmem:[%s362 + $0x48] sm:$0xf] %v1101
        %1318 = vst [vmem:[%s362 + $0x50] sm:$0xf] %v1170
        %1319 = vst [vmem:[%s362 + $0x58] sm:$0xf] %v1172
        %1320 = vst [vmem:[%s362 + $0x60] sm:$0xf] %v1241
        %1321 = vst [vmem:[%s362 + $0x68] sm:$0xf] %v1243
        %1322 = vst [vmem:[%s362 + $0x70] sm:$0xf] %v1312
        %1323 = vst [vmem:[%s362 + $0x78] sm:$0xf] %v1314
        %v1324 = vld [vmem:[%s357] sm:$0xf]
        %v1325 = vld [vmem:[#allocation4] sm:$0xff]
        %v1326 = vld [vmem:[#allocation4 + $0x8] sm:$0xff]
        %v1327 = vld [vmem:[#allocation4 + $0x10] sm:$0xff]
        %v1328 = vld [vmem:[#allocation4 + $0x18] sm:$0xff]
        %v1329 = vld [vmem:[#allocation4 + $0x20] sm:$0xff]
        %v1330 = vld [vmem:[#allocation4 + $0x28] sm:$0xff]
        %v1331 = vld [vmem:[#allocation4 + $0x30] sm:$0xff]
        %v1332 = vld [vmem:[#allocation4 + $0x38] sm:$0xff]
        %v1333 = vld [vmem:[#allocation4 + $0x40] sm:$0xff]
        %v1334 = vld [vmem:[#allocation4 + $0x48] sm:$0xff]
        %v1335 = vld [vmem:[#allocation4 + $0x50] sm:$0xff]
        %v1336 = vld [vmem:[#allocation4 + $0x58] sm:$0xff]
        %v1337 = vld [vmem:[#allocation4 + $0x60] sm:$0xff]
        %v1338 = vld [vmem:[#allocation4 + $0x68] sm:$0xff]
        %v1339 = vld [vmem:[#allocation4 + $0x70] sm:$0xff]
        %v1340 = vld [vmem:[#allocation4 + $0x78] sm:$0xff]
        %vm1341 = vcmask 130048
        %v1343 = vsel %vm1341, %v1324, 0
        %1345 = vmatprep.subr.mxu0 %v1326
        %1346 = vmatpush1.msra.mxu0 %v1325
        %1347 = vmatprep.subr.mxu0 %v1334
        %1348 = vmatpush1.msra.mxu0 %v1333
        %1349 = vmatprep.subr.mxu0 0.0
        %1350 = vmatpush1.msra.mxu0 0.0
        %1351 = vmatprep.subr.mxu0 0.0
        %1352 = vmatpush1.msra.mxu0 0.0
        %1353 = vmatprep.subr.mxu0 0.0
        %1354 = vmatpush1.msra.mxu0 0.0
        %1355 = vmatprep.subr.mxu0 0.0
        %1356 = vmatpush1.msra.mxu0 0.0
        %1357 = vmatprep.subr.mxu0 0.0
        %1358 = vmatpush1.msra.mxu0 0.0
        %1359 = vmatprep.subr.mxu0 0.0
        %1360 = vmatpush1.msra.mxu0 0.0
        %1361 = vmatprep.subr.mxu0 0.0
        %1362 = vmatpush1.msra.mxu0 0.0
        %1363 = vmatprep.subr.mxu0 0.0
        %1364 = vmatpush1.msra.mxu0 0.0
        %1365 = vmatprep.subr.mxu0 0.0
        %1366 = vmatpush1.msra.mxu0 0.0
        %1367 = vmatprep.subr.mxu0 0.0
        %1368 = vmatpush1.msra.mxu0 0.0
        %1369 = vmatprep.subr.mxu0 0.0
        %1370 = vmatpush1.msra.mxu0 0.0
        %1371 = vmatprep.subr.mxu0 0.0
        %1372 = vmatpush1.msra.mxu0 0.0
        %1373 = vmatprep.subr.mxu0 0.0
        %1374 = vmatpush1.msra.mxu0 0.0
        %1375 = vmatprep.subr.mxu0 0.0
        %1376 = vmatpush1.msra.mxu0 0.0
        %1377 = vmatprep.subr.mxu0 0.0
        %1378 = vmatpush1.msra.mxu0 0.0
        %1379 = vmatprep.subr.mxu0 0.0
        %1380 = vmatpush1.msra.mxu0 0.0
        %1381 = vmatprep.subr.mxu0 0.0
        %1382 = vmatpush1.msra.mxu0 0.0
        %1383 = vmatprep.subr.mxu0 0.0
        %1384 = vmatpush1.msra.mxu0 0.0
        %1385 = vmatprep.subr.mxu0 0.0
        %1386 = vmatpush1.msra.mxu0 0.0
        %1387 = vmatprep.subr.mxu0 0.0
        %1388 = vmatpush1.msra.mxu0 0.0
        %1389 = vmatprep.subr.mxu0 0.0
        %1390 = vmatpush1.msra.mxu0 0.0
        %1391 = vmatprep.subr.mxu0 0.0
        %1392 = vmatpush1.msra.mxu0 0.0
        %1393 = vmatprep.subr.mxu0 0.0
        %1394 = vmatpush1.msra.mxu0 0.0
        %1395 = vmatprep.subr.mxu0 0.0
        %1396 = vmatpush1.msra.mxu0 0.0
        %1397 = vmatprep.subr.mxu0 0.0
        %1398 = vmatpush1.msra.mxu0 0.0
        %1399 = vmatprep.subr.mxu0 0.0
        %1400 = vmatpush1.msra.mxu0 0.0
        %1401 = vmatprep.subr.mxu0 0.0
        %1402 = vmatpush1.msra.mxu0 0.0
        %1403 = vmatprep.subr.mxu0 0.0
        %1404 = vmatpush1.msra.mxu0 0.0
        %1405 = vmatprep.subr.mxu0 0.0
        %1406 = vmatpush1.msra.mxu0 0.0
        %1407 = vmatprep.subr.mxu0 0.0
        %1408 = vmatpush1.msra.mxu0 0.0
        %1409 = vmatprep.mubr.f32.mxu0 0.0
        %1410 = vmatmul.mubr.f32.gmra.mrb[0].mxu0 %v1343
        %v1411 = vpop.f32.mrb[0].mxu0
        %v1412 = vadd.f32 0.0, %v1411
        %v1413 = vpop.f32.mrb[0].mxu0
        %v1414 = vadd.f32 0.0, %v1413
        %1415 = vdwg.mxu0
        %1416 = vmatprep.subr.mxu0 %v1328
        %1417 = vmatpush1.msra.mxu0 %v1327
        %1418 = vmatprep.subr.mxu0 %v1336
        %1419 = vmatpush1.msra.mxu0 %v1335
        %1420 = vmatprep.subr.mxu0 0.0
        %1421 = vmatpush1.msra.mxu0 0.0
        %1422 = vmatprep.subr.mxu0 0.0
        %1423 = vmatpush1.msra.mxu0 0.0
        %1424 = vmatprep.subr.mxu0 0.0
        %1425 = vmatpush1.msra.mxu0 0.0
        %1426 = vmatprep.subr.mxu0 0.0
        %1427 = vmatpush1.msra.mxu0 0.0
        %1428 = vmatprep.subr.mxu0 0.0
        %1429 = vmatpush1.msra.mxu0 0.0
        %1430 = vmatprep.subr.mxu0 0.0
        %1431 = vmatpush1.msra.mxu0 0.0
        %1432 = vmatprep.subr.mxu0 0.0
        %1433 = vmatpush1.msra.mxu0 0.0
        %1434 = vmatprep.subr.mxu0 0.0
        %1435 = vmatpush1.msra.mxu0 0.0
        %1436 = vmatprep.subr.mxu0 0.0
        %1437 = vmatpush1.msra.mxu0 0.0
        %1438 = vmatprep.subr.mxu0 0.0
        %1439 = vmatpush1.msra.mxu0 0.0
        %1440 = vmatprep.subr.mxu0 0.0
        %1441 = vmatpush1.msra.mxu0 0.0
        %1442 = vmatprep.subr.mxu0 0.0
        %1443 = vmatpush1.msra.mxu0 0.0
        %1444 = vmatprep.subr.mxu0 0.0
        %1445 = vmatpush1.msra.mxu0 0.0
        %1446 = vmatprep.subr.mxu0 0.0
        %1447 = vmatpush1.msra.mxu0 0.0
        %1448 = vmatprep.subr.mxu0 0.0
        %1449 = vmatpush1.msra.mxu0 0.0
        %1450 = vmatprep.subr.mxu0 0.0
        %1451 = vmatpush1.msra.mxu0 0.0
        %1452 = vmatprep.subr.mxu0 0.0
        %1453 = vmatpush1.msra.mxu0 0.0
        %1454 = vmatprep.subr.mxu0 0.0
        %1455 = vmatpush1.msra.mxu0 0.0
        %1456 = vmatprep.subr.mxu0 0.0
        %1457 = vmatpush1.msra.mxu0 0.0
        %1458 = vmatprep.subr.mxu0 0.0
        %1459 = vmatpush1.msra.mxu0 0.0
        %1460 = vmatprep.subr.mxu0 0.0
        %1461 = vmatpush1.msra.mxu0 0.0
        %1462 = vmatprep.subr.mxu0 0.0
        %1463 = vmatpush1.msra.mxu0 0.0
        %1464 = vmatprep.subr.mxu0 0.0
        %1465 = vmatpush1.msra.mxu0 0.0
        %1466 = vmatprep.subr.mxu0 0.0
        %1467 = vmatpush1.msra.mxu0 0.0
        %1468 = vmatprep.subr.mxu0 0.0
        %1469 = vmatpush1.msra.mxu0 0.0
        %1470 = vmatprep.subr.mxu0 0.0
        %1471 = vmatpush1.msra.mxu0 0.0
        %1472 = vmatprep.subr.mxu0 0.0
        %1473 = vmatpush1.msra.mxu0 0.0
        %1474 = vmatprep.subr.mxu0 0.0
        %1475 = vmatpush1.msra.mxu0 0.0
        %1476 = vmatprep.subr.mxu0 0.0
        %1477 = vmatpush1.msra.mxu0 0.0
        %1478 = vmatprep.subr.mxu0 0.0
        %1479 = vmatpush1.msra.mxu0 0.0
        %1480 = vmatprep.mubr.f32.mxu0 0.0
        %1481 = vmatmul.mubr.f32.gmra.mrb[0].mxu0 %v1343
        %v1482 = vpop.f32.mrb[0].mxu0
        %v1483 = vadd.f32 0.0, %v1482
        %v1484 = vpop.f32.mrb[0].mxu0
        %v1485 = vadd.f32 0.0, %v1484
        %1486 = vdwg.mxu0
        %1487 = vmatprep.subr.mxu0 %v1330
        %1488 = vmatpush1.msra.mxu0 %v1329
        %1489 = vmatprep.subr.mxu0 %v1338
        %1490 = vmatpush1.msra.mxu0 %v1337
        %1491 = vmatprep.subr.mxu0 0.0
        %1492 = vmatpush1.msra.mxu0 0.0
        %1493 = vmatprep.subr.mxu0 0.0
        %1494 = vmatpush1.msra.mxu0 0.0
        %1495 = vmatprep.subr.mxu0 0.0
        %1496 = vmatpush1.msra.mxu0 0.0
        %1497 = vmatprep.subr.mxu0 0.0
        %1498 = vmatpush1.msra.mxu0 0.0
        %1499 = vmatprep.subr.mxu0 0.0
        %1500 = vmatpush1.msra.mxu0 0.0
        %1501 = vmatprep.subr.mxu0 0.0
        %1502 = vmatpush1.msra.mxu0 0.0
        %1503 = vmatprep.subr.mxu0 0.0
        %1504 = vmatpush1.msra.mxu0 0.0
        %1505 = vmatprep.subr.mxu0 0.0
        %1506 = vmatpush1.msra.mxu0 0.0
        %1507 = vmatprep.subr.mxu0 0.0
        %1508 = vmatpush1.msra.mxu0 0.0
        %1509 = vmatprep.subr.mxu0 0.0
        %1510 = vmatpush1.msra.mxu0 0.0
        %1511 = vmatprep.subr.mxu0 0.0
        %1512 = vmatpush1.msra.mxu0 0.0
        %1513 = vmatprep.subr.mxu0 0.0
        %1514 = vmatpush1.msra.mxu0 0.0
        %1515 = vmatprep.subr.mxu0 0.0
        %1516 = vmatpush1.msra.mxu0 0.0
        %1517 = vmatprep.subr.mxu0 0.0
        %1518 = vmatpush1.msra.mxu0 0.0
        %1519 = vmatprep.subr.mxu0 0.0
        %1520 = vmatpush1.msra.mxu0 0.0
        %1521 = vmatprep.subr.mxu0 0.0
        %1522 = vmatpush1.msra.mxu0 0.0
        %1523 = vmatprep.subr.mxu0 0.0
        %1524 = vmatpush1.msra.mxu0 0.0
        %1525 = vmatprep.subr.mxu0 0.0
        %1526 = vmatpush1.msra.mxu0 0.0
        %1527 = vmatprep.subr.mxu0 0.0
        %1528 = vmatpush1.msra.mxu0 0.0
        %1529 = vmatprep.subr.mxu0 0.0
        %1530 = vmatpush1.msra.mxu0 0.0
        %1531 = vmatprep.subr.mxu0 0.0
        %1532 = vmatpush1.msra.mxu0 0.0
        %1533 = vmatprep.subr.mxu0 0.0
        %1534 = vmatpush1.msra.mxu0 0.0
        %1535 = vmatprep.subr.mxu0 0.0
        %1536 = vmatpush1.msra.mxu0 0.0
        %1537 = vmatprep.subr.mxu0 0.0
        %1538 = vmatpush1.msra.mxu0 0.0
        %1539 = vmatprep.subr.mxu0 0.0
        %1540 = vmatpush1.msra.mxu0 0.0
        %1541 = vmatprep.subr.mxu0 0.0
        %1542 = vmatpush1.msra.mxu0 0.0
        %1543 = vmatprep.subr.mxu0 0.0
        %1544 = vmatpush1.msra.mxu0 0.0
        %1545 = vmatprep.subr.mxu0 0.0
        %1546 = vmatpush1.msra.mxu0 0.0
        %1547 = vmatprep.subr.mxu0 0.0
        %1548 = vmatpush1.msra.mxu0 0.0
        %1549 = vmatprep.subr.mxu0 0.0
        %1550 = vmatpush1.msra.mxu0 0.0
        %1551 = vmatprep.mubr.f32.mxu0 0.0
        %1552 = vmatmul.mubr.f32.gmra.mrb[0].mxu0 %v1343
        %v1553 = vpop.f32.mrb[0].mxu0
        %v1554 = vadd.f32 0.0, %v1553
        %v1555 = vpop.f32.mrb[0].mxu0
        %v1556 = vadd.f32 0.0, %v1555
        %1557 = vdwg.mxu0
        %1558 = vmatprep.subr.mxu0 %v1332
        %1559 = vmatpush1.msra.mxu0 %v1331
        %1560 = vmatprep.subr.mxu0 %v1340
        %1561 = vmatpush1.msra.mxu0 %v1339
        %1562 = vmatprep.subr.mxu0 0.0
        %1563 = vmatpush1.msra.mxu0 0.0
        %1564 = vmatprep.subr.mxu0 0.0
        %1565 = vmatpush1.msra.mxu0 0.0
        %1566 = vmatprep.subr.mxu0 0.0
        %1567 = vmatpush1.msra.mxu0 0.0
        %1568 = vmatprep.subr.mxu0 0.0
        %1569 = vmatpush1.msra.mxu0 0.0
        %1570 = vmatprep.subr.mxu0 0.0
        %1571 = vmatpush1.msra.mxu0 0.0
        %1572 = vmatprep.subr.mxu0 0.0
        %1573 = vmatpush1.msra.mxu0 0.0
        %1574 = vmatprep.subr.mxu0 0.0
        %1575 = vmatpush1.msra.mxu0 0.0
        %1576 = vmatprep.subr.mxu0 0.0
        %1577 = vmatpush1.msra.mxu0 0.0
        %1578 = vmatprep.subr.mxu0 0.0
        %1579 = vmatpush1.msra.mxu0 0.0
        %1580 = vmatprep.subr.mxu0 0.0
        %1581 = vmatpush1.msra.mxu0 0.0
        %1582 = vmatprep.subr.mxu0 0.0
        %1583 = vmatpush1.msra.mxu0 0.0
        %1584 = vmatprep.subr.mxu0 0.0
        %1585 = vmatpush1.msra.mxu0 0.0
        %1586 = vmatprep.subr.mxu0 0.0
        %1587 = vmatpush1.msra.mxu0 0.0
        %1588 = vmatprep.subr.mxu0 0.0
        %1589 = vmatpush1.msra.mxu0 0.0
        %1590 = vmatprep.subr.mxu0 0.0
        %1591 = vmatpush1.msra.mxu0 0.0
        %1592 = vmatprep.subr.mxu0 0.0
        %1593 = vmatpush1.msra.mxu0 0.0
        %1594 = vmatprep.subr.mxu0 0.0
        %1595 = vmatpush1.msra.mxu0 0.0
        %1596 = vmatprep.subr.mxu0 0.0
        %1597 = vmatpush1.msra.mxu0 0.0
        %1598 = vmatprep.subr.mxu0 0.0
        %1599 = vmatpush1.msra.mxu0 0.0
        %1600 = vmatprep.subr.mxu0 0.0
        %1601 = vmatpush1.msra.mxu0 0.0
        %1602 = vmatprep.subr.mxu0 0.0
        %1603 = vmatpush1.msra.mxu0 0.0
        %1604 = vmatprep.subr.mxu0 0.0
        %1605 = vmatpush1.msra.mxu0 0.0
        %1606 = vmatprep.subr.mxu0 0.0
        %1607 = vmatpush1.msra.mxu0 0.0
        %1608 = vmatprep.subr.mxu0 0.0
        %1609 = vmatpush1.msra.mxu0 0.0
        %1610 = vmatprep.subr.mxu0 0.0
        %1611 = vmatpush1.msra.mxu0 0.0
        %1612 = vmatprep.subr.mxu0 0.0
        %1613 = vmatpush1.msra.mxu0 0.0
        %1614 = vmatprep.subr.mxu0 0.0
        %1615 = vmatpush1.msra.mxu0 0.0
        %1616 = vmatprep.subr.mxu0 0.0
        %1617 = vmatpush1.msra.mxu0 0.0
        %1618 = vmatprep.subr.mxu0 0.0
        %1619 = vmatpush1.msra.mxu0 0.0
        %1620 = vmatprep.subr.mxu0 0.0
        %1621 = vmatpush1.msra.mxu0 0.0
        %1622 = vmatprep.mubr.f32.mxu0 0.0
        %1623 = vmatmul.mubr.f32.gmra.mrb[0].mxu0 %v1343
        %v1624 = vpop.f32.mrb[0].mxu0
        %v1625 = vadd.f32 0.0, %v1624
        %v1626 = vpop.f32.mrb[0].mxu0
        %v1627 = vadd.f32 0.0, %v1626
        %1628 = vdwg.mxu0
        %v1637 = vrot.slane %v1412, 4
        %v1638 = vrot.slane %v1414, 4
        %v1639 = vrot.slane %v1483, 4
        %v1640 = vrot.slane %v1485, 4
        %v1641 = vrot.slane %v1554, 4
        %v1642 = vrot.slane %v1556, 4
        %v1643 = vrot.slane %v1625, 4
        %v1644 = vrot.slane %v1627, 4
        %1653 = vst [vmem:[%s362 + $0x40] sm:$0xf0] %v1637
        %1654 = vst [vmem:[%s362 + $0x48] sm:$0xf0] %v1638
        %1655 = vst [vmem:[%s362 + $0x50] sm:$0xf0] %v1639
        %1656 = vst [vmem:[%s362 + $0x58] sm:$0xf0] %v1640
        %1657 = vst [vmem:[%s362 + $0x60] sm:$0xf0] %v1641
        %1658 = vst [vmem:[%s362 + $0x68] sm:$0xf0] %v1642
        %1659 = vst [vmem:[%s362 + $0x70] sm:$0xf0] %v1643
        %1660 = vst [vmem:[%s362 + $0x78] sm:$0xf0] %v1644
        %p1661 = scmp.lt.s32.totalorder %s20, 1
        %s1662 = scalar_select %p1661, %s20, 1
        %s1663 = smul.addr %s1662, 16
        %s1664 = smul.addr %s1663, 8
        %s1665 = scalar_lea.vmem %s7, %s1664
        // Predicated region
        $region57: #{deep_supervision_forward.1} parent=47 // pred_check
          %p1666 = pneg %p205
        $region58: #{deep_supervision_forward.1} parent=47 // pred_check_branch
          %1668 = sbr.rel (%p1666) target = $region60
        $region59: #{deep_supervision_forward.1} parent=47 // pred_region
          _
        $region60: #{deep_supervision_forward.1} parent=47 // pred_fallthru
          _
      $region48: #{deep_supervision_forward.1} parent=5 // pred_fallthru
        _
      %p1669 = scmp.le.s32.totalorder 2, %s15
      // Predicated region
      $region61: #{deep_supervision_forward.1} parent=5 // pred_check
        %p1670 = pneg %p1669
      $region62: #{deep_supervision_forward.1} parent=5 // pred_check_branch
        %1672 = sbr.rel (%p1670) target = $region64
      $region63: #{deep_supervision_forward.1} parent=5 // pred_region
        %s1673 = ssub.s32 %s15, 2
        // Predicated region
        $region65: #{deep_supervision_forward.1} parent=63 // pred_check
          %p1674 = pneg %p211
        $region66: #{deep_supervision_forward.1} parent=63 // pred_check_branch
          %1676 = sbr.rel (%p1674) target = $region68
        $region67: #{deep_supervision_forward.1} parent=63 // pred_region
          %p1677 = scmp.lt.s32.totalorder %s21, 1
          %s1678 = scalar_select %p1677, %s21, 1
          %s1679 = smul.addr %s1678, 16
          %s1680 = smul.addr %s1679, 8
          %s1681 = scalar_lea.vmem %s7, %s1680
        $region68: #{deep_supervision_forward.1} parent=63 // pred_fallthru
          _
      $region64: #{deep_supervision_forward.1} parent=5 // pred_fallthru
        _
    $region6: #{deep_supervision_forward.1} parent=1 // loop_footer
      %s19 = sadd.s32 1, %s15
    $region7: #{deep_supervision_forward.1} parent=1 // loop_footer_branch
      %14 = sbr.rel target = $region3
    $region8: #{deep_supervision_forward.1} parent=1 // loop_exit
      _
    %1682 = vsyncpa [#allocation3], 1
    %s1683 = scalar_lea.sflag [#allocation3], 1
    %1684 = vsyncpa %s1683, 1
    %1685 = vsyncpa [#allocation5], 1

</llo_original>
